<compile_context>
chip_gen: v6e
topology: v6e:2x2x1
jax: 0.10.0
libtpu: 0.0.40
codegen_flags: <defaults>
</compile_context>

<pallas_src>
import functools

import jax
import jax.numpy as jnp
from jax.experimental import pallas as pl
from jax.experimental.pallas import tpu as pltpu


def _round_up(x, m):
    return (x + m - 1) // m * m


# ----------------------------- Pallas kernels ------------------------------

def _act_matmul_kernel(a_ref, w_ref, o_ref, acc_ref, *, negative_slope):
    """Fused (Leaky)ReLU on an im2col tile followed by an MXU matmul.

    Grid = (G, M_tiles, K_tiles); K is the reduction axis ("arbitrary") with an
    f32 VMEM accumulator initialized at k==0 and written out at the last k.
    Activations/weights arrive as bf16; activation math is done in f32 (v5e VPU
    has no bf16 path) and the MXU runs bf16 x bf16 -> f32.
    """
    k = pl.program_id(2)

    @pl.when(k == 0)
    def _():
        acc_ref[...] = jnp.zeros_like(acc_ref)

    a = a_ref[...].astype(jnp.float32)
    a = jnp.where(a > 0, a, negative_slope * a)          # 0.0 -> ReLU, 0.2 -> LeakyReLU
    acc_ref[...] += jnp.dot(a.astype(jnp.bfloat16), w_ref[...],
                            preferred_element_type=jnp.float32)

    @pl.when(k == pl.num_programs(2) - 1)
    def _():
        o_ref[...] = acc_ref[...]


def fused_act_matmul(a, w, negative_slope, *, tm_max=512, tk_max=512):
    """Batched matmul with fused pre-activation: [G,M,K] x [G,K,N] -> [G,Mp,Np] f32.

    Pads K/N to multiples of 128 (lane-dense) and M to the row tile; padded rows /
    columns are zero (activation(0)=0 so padding is inert). Returns (out, tm).
    """
    G, M, K = a.shape
    Gw, Kw, N = w.shape
    assert G == Gw and K == Kw

    Np = _round_up(N, 128)
    Kp = _round_up(K, 128)
    tk = Kp if Kp <= tk_max else tk_max
    Kp = _round_up(Kp, tk)
    tm = min(tm_max, _round_up(M, 16))                    # bf16 sublane packing
    Mp = _round_up(M, tm)

    a_p = jnp.pad(a.astype(jnp.bfloat16), ((0, 0), (0, Mp - M), (0, Kp - K)))
    w_p = jnp.pad(w.astype(jnp.bfloat16), ((0, 0), (0, Kp - K), (0, Np - N)))

    out = pl.pallas_call(
        functools.partial(_act_matmul_kernel, negative_slope=negative_slope),
        out_shape=jax.ShapeDtypeStruct((G, Mp, Np), jnp.float32),
        grid=(G, Mp // tm, Kp // tk),
        in_specs=[
            pl.BlockSpec((None, tm, tk), lambda g, i, k: (g, i, k)),
            pl.BlockSpec((None, tk, Np), lambda g, i, k: (g, k, 0)),
        ],
        out_specs=pl.BlockSpec((None, tm, Np), lambda g, i, k: (g, i, 0)),
        scratch_shapes=[pltpu.VMEM((tm, Np), jnp.float32)],
        compiler_params=pltpu.CompilerParams(
            dimension_semantics=("parallel", "parallel", "arbitrary")),
    )(a_p, w_p)
    return out, tm


def _bn_stats_kernel(u_ref, stat_ref, *, inv_count):
    """Pass 1: tiled sum / sum-of-squares reduction over rows into a resident
    (2, C) stats block; converted to (mean, biased var) at the last tile.
    Zero padding rows/cols contribute nothing; inv_count uses the true row count."""
    i = pl.program_id(0)

    @pl.when(i == 0)
    def _():
        stat_ref[...] = jnp.zeros_like(stat_ref)

    u = u_ref[...]
    stat_ref[0:1, :] += jnp.sum(u, axis=0, keepdims=True)
    stat_ref[1:2, :] += jnp.sum(u * u, axis=0, keepdims=True)

    @pl.when(i == pl.num_programs(0) - 1)
    def _():
        mean = stat_ref[0:1, :] * inv_count
        var = jnp.maximum(stat_ref[1:2, :] * inv_count - mean * mean, 0.0)
        stat_ref[0:1, :] = mean
        stat_ref[1:2, :] = var


def _bn_norm_kernel(u_ref, stat_ref, gamma_ref, beta_ref, o_ref, *, eps):
    """Pass 2: tiled, lane-dense normalize + affine."""
    mean = stat_ref[0:1, :]
    inv = jax.lax.rsqrt(stat_ref[1:2, :] + eps)
    o_ref[...] = (u_ref[...] - mean) * (inv * gamma_ref[...]) + beta_ref[...]


def batchnorm_rows(u, gamma, beta, count, *, eps, tr):
    """Training-mode BatchNorm2d over rows of u [R, Cp] (biased variance, like torch).
    Only the first `count` rows / real channels carry data; padding is zeros."""
    R, Cp = u.shape
    assert R % tr == 0
    grid = (R // tr,)

    stats = pl.pallas_call(
        functools.partial(_bn_stats_kernel, inv_count=1.0 / count),
        out_shape=jax.ShapeDtypeStruct((2, Cp), jnp.float32),
        grid=grid,
        in_specs=[pl.BlockSpec((tr, Cp), lambda i: (i, 0))],
        out_specs=pl.BlockSpec((2, Cp), lambda i: (0, 0)),
        compiler_params=pltpu.CompilerParams(dimension_semantics=("arbitrary",)),
    )(u)

    return pl.pallas_call(
        functools.partial(_bn_norm_kernel, eps=eps),
        out_shape=jax.ShapeDtypeStruct((R, Cp), jnp.float32),
        grid=grid,
        in_specs=[
            pl.BlockSpec((tr, Cp), lambda i: (i, 0)),
            pl.BlockSpec((2, Cp), lambda i: (0, 0)),
            pl.BlockSpec((1, Cp), lambda i: (0, 0)),
            pl.BlockSpec((1, Cp), lambda i: (0, 0)),
        ],
        out_specs=pl.BlockSpec((tr, Cp), lambda i: (i, 0)),
        compiler_params=pltpu.CompilerParams(dimension_semantics=("parallel",)),
    )(u, stats, gamma, beta)


# ------------------------------- JAX glue -----------------------------------

def _im2col_nhwc(x, kh, kw, stride, pad):
    """im2col: rows [N*OH*OW, kh*kw*C] with column order ((i*kw+j)*C + ci)."""
    if pad:
        x = jnp.pad(x, ((0, 0), (pad, pad), (pad, pad), (0, 0)))
    n, h, w, c = x.shape
    oh = (h - kh) // stride + 1
    ow = (w - kw) // stride + 1
    patches = []
    for i in range(kh):
        for j in range(kw):
            patches.append(x[:, i:i + stride * oh:stride, j:j + stride * ow:stride, :])
    cols = jnp.stack(patches, axis=3)                     # [n, oh, ow, kh*kw, c]
    return cols.reshape(n * oh * ow, kh * kw * c), (n, oh, ow)


def unet_innermost_forward(x_nchw, params):
    """forward(x) = cat([x, BN(ConvT(ReLU(Conv(LeakyReLU(x)))))], channel)."""
    n, cin, h, w = x_nchw.shape
    assert h % 2 == 0 and w % 2 == 0
    x = jnp.transpose(x_nchw, (0, 2, 3, 1))               # NHWC for channel-last im2col

    # ---- down path: LeakyReLU(0.2) -> Conv2d(cin -> inner, k4 s2 p1, bias=False)
    w_down = params["w_down"]                             # torch layout [inner, cin, 4, 4]
    inner_nc = w_down.shape[0]
    a1, (_, oh, ow) = _im2col_nhwc(x, 4, 4, 2, 1)         # [M1, 16*cin]
    w1 = jnp.transpose(w_down, (2, 3, 1, 0)).reshape(4 * 4 * cin, inner_nc)
    m1 = n * oh * ow
    d_pad, _ = fused_act_matmul(a1[None], w1[None], 0.2)
    d = d_pad[0, :m1, :inner_nc].reshape(n, oh, ow, inner_nc)

    # ---- up path: ReLU -> ConvTranspose2d(inner -> outer, k4 s2 p1, bias=False)
    # Phase decomposition: output phase (py, px) = (y%2, x%2) is a 2x2-kernel
    # stride-1 conv over d (padded by 1), using kernel taps i = 3-py-2*di,
    # j = 3-px-2*dj.  ReLU commutes with the gather / zero padding (ReLU(0)=0),
    # so it is fused into the matmul kernel.
    w_up = params["w_up"]                                 # torch layout [inner, outer, 4, 4]
    outer_nc = w_up.shape[1]
    dp = jnp.pad(d, ((0, 0), (1, 1), (1, 1), (0, 0)))     # [n, oh+2, ow+2, inner]
    a_ph, w_ph = [], []
    for py in range(2):
        for px in range(2):
            patches = [dp[:, py + di:py + di + oh, px + dj:px + dj + ow, :]
                       for di in range(2) for dj in range(2)]
            cols = jnp.stack(patches, axis=3)             # [n, oh, ow, 4, inner]
            a_ph.append(cols.reshape(n * oh * ow, 4 * inner_nc))
            wk = w_up[:, :, 3 - py::-2, 3 - px::-2]       # [inner, outer, 2(di), 2(dj)]
            w_ph.append(jnp.transpose(wk, (2, 3, 0, 1)).reshape(4 * inner_nc, outer_nc))
    a2 = jnp.stack(a_ph, axis=0)                          # [4, M2, 4*inner]
    w2 = jnp.stack(w_ph, axis=0)                          # [4, 4*inner, outer]
    m2 = n * oh * ow
    u_pad, tm2 = fused_act_matmul(a2, w2, 0.0)            # [4, M2p, Np]
    m2p, np2 = u_pad.shape[1], u_pad.shape[2]

    # ---- BatchNorm2d(outer) with batch statistics: two-pass tiled Pallas BN over
    # all 4*M2 real output rows (padded rows are zero and don't affect the stats).
    u_flat = u_pad.reshape(4 * m2p, np2)
    gamma = jnp.pad(params["gamma"].reshape(1, outer_nc).astype(jnp.float32),
                    ((0, 0), (0, np2 - outer_nc)))
    beta = jnp.pad(params["beta"].reshape(1, outer_nc).astype(jnp.float32),
                   ((0, 0), (0, np2 - outer_nc)))
    hn = batchnorm_rows(u_flat, gamma, beta, count=4 * m2, eps=1e-5, tr=tm2)

    # un-pad, reassemble the 4 phases into the 2x-upsampled spatial grid
    hn = hn.reshape(2, 2, m2p, np2)[:, :, :m2, :outer_nc]
    hn = hn.reshape(2, 2, n, oh, ow, outer_nc)
    hn = jnp.transpose(hn, (2, 3, 0, 4, 1, 5)).reshape(n, 2 * oh, 2 * ow, outer_nc)

    # ---- skip connection: cat([x, model(x)], channel) in NCHW; x feeds the concat
    # directly (no extra kernel round-trip for the skip branch).
    up_nchw = jnp.transpose(hn, (0, 3, 1, 2))
    return jnp.concatenate([x_nchw, up_nchw], axis=1)


# --------------------------------- main --------------------------------------

if __name__ == "__main__":
    key = jax.random.PRNGKey(0)
    k1, k2, k3, k4, k5 = jax.random.split(key, 5)

    N, outer_nc, inner_nc, H, W = 2, 4, 8, 16, 16         # input_nc = outer_nc (None case)
    x = jax.random.normal(k1, (N, outer_nc, H, W), jnp.float32)

    params = {
        # Conv2d(input_nc, inner_nc, 4, 2, 1, bias=False): weight [inner, in, 4, 4]
        "w_down": 0.1 * jax.random.normal(k2, (inner_nc, outer_nc, 4, 4), jnp.float32),
        # ConvTranspose2d(inner_nc, outer_nc, 4, 2, 1, bias=False): weight [inner, outer, 4, 4]
        "w_up": 0.1 * jax.random.normal(k3, (inner_nc, outer_nc, 4, 4), jnp.float32),
        # BatchNorm2d(outer_nc) affine params
        "gamma": 1.0 + 0.1 * jax.random.normal(k4, (outer_nc,), jnp.float32),
        "beta": 0.1 * jax.random.normal(k5, (outer_nc,), jnp.float32),
    }

    out = jax.jit(unet_innermost_forward)(x, params)
    jax.block_until_ready(out)
    assert out.shape == (N, 2 * outer_nc, H, W)
    assert out.dtype == jnp.float32
    assert bool(jnp.all(jnp.isfinite(out)))
    print("KERNEL_OK")
</pallas_src>

<mosaic_0001>
module attributes {stable_mosaic.version = 11 : i64} {
  func.func @_act_matmul_kernel(%arg0: i32, %arg1: i32, %arg2: i32, %arg3: memref<1x128x128xbf16, #tpu.memory_space<vmem>>, %arg4: memref<1x128x128xbf16, #tpu.memory_space<vmem>>, %arg5: memref<1x128x128xf32, #tpu.memory_space<vmem>>, %arg6: memref<128x128xf32, #tpu.memory_space<vmem>>) attributes {dimension_semantics = [#tpu.dimension_semantics<parallel>, #tpu.dimension_semantics<parallel>, #tpu.dimension_semantics<arbitrary>], iteration_bounds = array<i64: 1, 1, 1>, scalar_prefetch = 0 : i64, scratch_operands = 1 : i64, tpu.core_type = #tpu.core_type<tc>, window_params = [{transform_indices = @transform_0, window_bounds = array<i64: 1, 128, 128>}, {transform_indices = @transform_1, window_bounds = array<i64: 1, 128, 128>}, {transform_indices = @transform_2, window_bounds = array<i64: 1, 128, 128>}]} {
    %c0_i32 = arith.constant 0 : i32
    %0 = arith.cmpi eq, %arg2, %c0_i32 : i32
    %1 = arith.extui %0 : i1 to i32
    %c0_i32_0 = arith.constant 0 : i32
    %2 = arith.cmpi ne, %1, %c0_i32_0 : i32
    scf.if %2 {
      %cst_14 = arith.constant 0.000000e+00 : f32
      %21 = vector.broadcast %cst_14 : f32 to vector<128x128xf32>
      %c0_15 = arith.constant 0 : index
      %c0_16 = arith.constant 0 : index
      %22 = vector.load %arg6[%c0_15, %c0_16] : memref<128x128xf32, #tpu.memory_space<vmem>>, vector<128x128xf32>
      tpu.vector_store %arg6[%c0_15, %c0_16], %21 {strides = array<i32>} : memref<128x128xf32, #tpu.memory_space<vmem>>, vector<128x128xf32>,
    } else {
    }
    %c0 = arith.constant 0 : index
    %c0_1 = arith.constant 0 : index
    %c0_2 = arith.constant 0 : index
    %3 = vector.load %arg3[%c0, %c0_1, %c0_2] : memref<1x128x128xbf16, #tpu.memory_space<vmem>>, vector<1x128x128xbf16>
    %4 = vector.shape_cast %3 : vector<1x128x128xbf16> to vector<128x128xbf16>
    %5 = arith.extf %4 : vector<128x128xbf16> to vector<128x128xf32>
    %cst = arith.constant 0.000000e+00 : f32
    %6 = vector.broadcast %cst : f32 to vector<128x128xf32>
    %7 = arith.cmpf ogt, %5, %6 : vector<128x128xf32>
    %cst_3 = arith.constant 2.000000e-01 : f32
    %8 = vector.broadcast %cst_3 : f32 to vector<128x128xf32>
    %9 = arith.mulf %8, %5 : vector<128x128xf32>
    %10 = arith.select %7, %5, %9 : vector<128x128xi1>, vector<128x128xf32>
    %c0_4 = arith.constant 0 : index
    %c0_5 = arith.constant 0 : index
    %11 = vector.load %arg6[%c0_4, %c0_5] : memref<128x128xf32, #tpu.memory_space<vmem>>, vector<128x128xf32>
    %12 = arith.truncf %10 : vector<128x128xf32> to vector<128x128xbf16>
    %c0_6 = arith.constant 0 : index
    %c0_7 = arith.constant 0 : index
    %c0_8 = arith.constant 0 : index
    %13 = vector.load %arg4[%c0_6, %c0_7, %c0_8] : memref<1x128x128xbf16, #tpu.memory_space<vmem>>, vector<1x128x128xbf16>
    %14 = vector.shape_cast %13 : vector<1x128x128xbf16> to vector<128x128xbf16>
    %cst_9 = arith.constant dense<0.000000e+00> : vector<128x128xf32>
    %15 = tpu.matmul %12, %14, %cst_9 {dimension_numbers = #tpu.dot_dimension_numbers<[1], [0], [0], [1], [0, 0, 1, 1], [], []>} : vector<128x128xbf16>, vector<128x128xbf16>, vector<128x128xf32> -> vector<128x128xf32>
    %16 = arith.addf %11, %15 : vector<128x128xf32>
    %c0_10 = arith.constant 0 : index
    %c0_11 = arith.constant 0 : index
    %17 = vector.load %arg6[%c0_10, %c0_11] : memref<128x128xf32, #tpu.memory_space<vmem>>, vector<128x128xf32>
    tpu.vector_store %arg6[%c0_10, %c0_11], %16 {strides = array<i32>} : memref<128x128xf32, #tpu.memory_space<vmem>>, vector<128x128xf32>,
    %c0_i32_12 = arith.constant 0 : i32
    %18 = arith.cmpi eq, %arg2, %c0_i32_12 : i32
    %19 = arith.extui %18 : i1 to i32
    %c0_i32_13 = arith.constant 0 : i32
    %20 = arith.cmpi ne, %19, %c0_i32_13 : i32
    scf.if %20 {
      %c0_14 = arith.constant 0 : index
      %c0_15 = arith.constant 0 : index
      %21 = vector.load %arg6[%c0_14, %c0_15] : memref<128x128xf32, #tpu.memory_space<vmem>>, vector<128x128xf32>
      %c0_16 = arith.constant 0 : index
      %c0_17 = arith.constant 0 : index
      %c0_18 = arith.constant 0 : index
      %22 = vector.load %arg5[%c0_16, %c0_17, %c0_18] : memref<1x128x128xf32, #tpu.memory_space<vmem>>, vector<1x128x128xf32>
      %23 = vector.shape_cast %22 : vector<1x128x128xf32> to vector<128x128xf32>
      %24 = vector.shape_cast %21 : vector<128x128xf32> to vector<1x128x128xf32>
      tpu.vector_store %arg5[%c0_16, %c0_17, %c0_18], %24 {strides = array<i32>} : memref<1x128x128xf32, #tpu.memory_space<vmem>>, vector<1x128x128xf32>,
    } else {
    }
    return
  }
  func.func @transform_0(%arg0: i32, %arg1: i32, %arg2: i32) -> (i32, i32, i32) {
    %c0_i32 = arith.constant 0 : i32
    return %arg0, %arg1, %arg2 : i32, i32, i32
  }
  func.func @transform_1(%arg0: i32, %arg1: i32, %arg2: i32) -> (i32, i32, i32) {
    %c0_i32 = arith.constant 0 : i32
    %c0_i32_0 = arith.constant 0 : i32
    return %arg0, %arg2, %c0_i32 : i32, i32, i32
  }
  func.func @transform_2(%arg0: i32, %arg1: i32, %arg2: i32) -> (i32, i32, i32) {
    %c0_i32 = arith.constant 0 : i32
    %c0_i32_0 = arith.constant 0 : i32
    return %arg0, %arg1, %c0_i32 : i32, i32, i32
  }
}

module attributes {stable_mosaic.version = 11 : i64} {
  func.func @_bn_stats_kernel(%arg0: i32, %arg1: memref<128x128xf32, #tpu.memory_space<vmem>>, %arg2: memref<2x128xf32, #tpu.memory_space<vmem>>) attributes {dimension_semantics = [#tpu.dimension_semantics<arbitrary>], iteration_bounds = array<i64: 4>, scalar_prefetch = 0 : i64, scratch_operands = 0 : i64, tpu.core_type = #tpu.core_type<tc>, window_params = [{transform_indices = @transform_0, window_bounds = array<i64: 128, 128>}, {pipeline_mode = #tpu.pipeline_mode<synchronous>, transform_indices = @transform_1, window_bounds = array<i64: 2, 128>}]} {
    %c0_i32 = arith.constant 0 : i32
    %0 = arith.cmpi eq, %arg0, %c0_i32 : i32
    %1 = arith.extui %0 : i1 to i32
    %c0_i32_0 = arith.constant 0 : i32
    %2 = arith.cmpi ne, %1, %c0_i32_0 : i32
    scf.if %2 {
      %cst_11 = arith.constant 0.000000e+00 : f32
      %18 = vector.broadcast %cst_11 : f32 to vector<2x128xf32>
      %c0_12 = arith.constant 0 : index
      %c0_13 = arith.constant 0 : index
      %19 = vector.load %arg2[%c0_12, %c0_13] : memref<2x128xf32, #tpu.memory_space<vmem>>, vector<2x128xf32>
      tpu.vector_store %arg2[%c0_12, %c0_13], %18 {strides = array<i32>} : memref<2x128xf32, #tpu.memory_space<vmem>>, vector<2x128xf32>,
    } else {
    }
    %c0 = arith.constant 0 : index
    %c0_1 = arith.constant 0 : index
    %3 = vector.load %arg1[%c0, %c0_1] : memref<128x128xf32, #tpu.memory_space<vmem>>, vector<128x128xf32>
    %c0_2 = arith.constant 0 : index
    %c0_3 = arith.constant 0 : index
    %4 = vector.load %arg2[%c0_2, %c0_3] : memref<2x128xf32, #tpu.memory_space<vmem>>, vector<1x128xf32>
    %cst = arith.constant dense<0.000000e+00> : vector<128xf32>
    %5 = vector.multi_reduction <add>, %3, %cst [0] : vector<128x128xf32> to vector<128xf32>
    %6 = vector.shape_cast %5 : vector<128xf32> to vector<1x128xf32>
    %7 = arith.addf %4, %6 : vector<1x128xf32>
    %c0_4 = arith.constant 0 : index
    %c0_5 = arith.constant 0 : index
    %8 = vector.load %arg2[%c0_4, %c0_5] : memref<2x128xf32, #tpu.memory_space<vmem>>, vector<1x128xf32>
    tpu.vector_store %arg2[%c0_4, %c0_5], %7 {strides = array<i32>} : memref<2x128xf32, #tpu.memory_space<vmem>>, vector<1x128xf32>,
    %c1 = arith.constant 1 : index
    %c0_6 = arith.constant 0 : index
    %9 = vector.load %arg2[%c1, %c0_6] : memref<2x128xf32, #tpu.memory_space<vmem>>, vector<1x128xf32>
    %10 = arith.mulf %3, %3 : vector<128x128xf32>
    %cst_7 = arith.constant dense<0.000000e+00> : vector<128xf32>
    %11 = vector.multi_reduction <add>, %10, %cst_7 [0] : vector<128x128xf32> to vector<128xf32>
    %12 = vector.shape_cast %11 : vector<128xf32> to vector<1x128xf32>
    %13 = arith.addf %9, %12 : vector<1x128xf32>
    %c1_8 = arith.constant 1 : index
    %c0_9 = arith.constant 0 : index
    %14 = vector.load %arg2[%c1_8, %c0_9] : memref<2x128xf32, #tpu.memory_space<vmem>>, vector<1x128xf32>
    tpu.vector_store %arg2[%c1_8, %c0_9], %13 {strides = array<i32>} : memref<2x128xf32, #tpu.memory_space<vmem>>, vector<1x128xf32>,
    %c3_i32 = arith.constant 3 : i32
    %15 = arith.cmpi eq, %arg0, %c3_i32 : i32
    %16 = arith.extui %15 : i1 to i32
    %c0_i32_10 = arith.constant 0 : i32
    %17 = arith.cmpi ne, %16, %c0_i32_10 : i32
    scf.if %17 {
      %c0_11 = arith.constant 0 : index
      %c0_12 = arith.constant 0 : index
      %18 = vector.load %arg2[%c0_11, %c0_12] : memref<2x128xf32, #tpu.memory_space<vmem>>, vector<1x128xf32>
      %cst_13 = arith.constant 0.001953125 : f32
      %19 = vector.broadcast %cst_13 : f32 to vector<1x128xf32>
      %20 = arith.mulf %18, %19 : vector<1x128xf32>
      %c1_14 = arith.constant 1 : index
      %c0_15 = arith.constant 0 : index
      %21 = vector.load %arg2[%c1_14, %c0_15] : memref<2x128xf32, #tpu.memory_space<vmem>>, vector<1x128xf32>
      %cst_16 = arith.constant 0.001953125 : f32
      %22 = vector.broadcast %cst_16 : f32 to vector<1x128xf32>
      %23 = arith.mulf %21, %22 : vector<1x128xf32>
      %24 = arith.mulf %20, %20 : vector<1x128xf32>
      %25 = arith.subf %23, %24 : vector<1x128xf32>
      %cst_17 = arith.constant 0.000000e+00 : f32
      %26 = vector.broadcast %cst_17 : f32 to vector<1x128xf32>
      %27 = arith.maximumf %25, %26 : vector<1x128xf32>
      %c0_18 = arith.constant 0 : index
      %c0_19 = arith.constant 0 : index
      %28 = vector.load %arg2[%c0_18, %c0_19] : memref<2x128xf32, #tpu.memory_space<vmem>>, vector<1x128xf32>
      tpu.vector_store %arg2[%c0_18, %c0_19], %20 {strides = array<i32>} : memref<2x128xf32, #tpu.memory_space<vmem>>, vector<1x128xf32>,
      %c1_20 = arith.constant 1 : index
      %c0_21 = arith.constant 0 : index
      %29 = vector.load %arg2[%c1_20, %c0_21] : memref<2x128xf32, #tpu.memory_space<vmem>>, vector<1x128xf32>
      tpu.vector_store %arg2[%c1_20, %c0_21], %27 {strides = array<i32>} : memref<2x128xf32, #tpu.memory_space<vmem>>, vector<1x128xf32>,
    } else {
    }
    return
  }
  func.func @transform_0(%arg0: i32) -> (i32, i32) {
    %c0_i32 = arith.constant 0 : i32
    %c0_i32_0 = arith.constant 0 : i32
    return %arg0, %c0_i32 : i32, i32
  }
  func.func @transform_1(%arg0: i32) -> (i32, i32) {
    %c0_i32 = arith.constant 0 : i32
    %c0_i32_0 = arith.constant 0 : i32
    %c0_i32_1 = arith.constant 0 : i32
    return %c0_i32, %c0_i32_0 : i32, i32
  }
}

module attributes {stable_mosaic.version = 11 : i64} {
  func.func @_bn_norm_kernel(%arg0: i32, %arg1: memref<128x128xf32, #tpu.memory_space<vmem>>, %arg2: memref<2x128xf32, #tpu.memory_space<vmem>>, %arg3: memref<1x128xf32, #tpu.memory_space<vmem>>, %arg4: memref<1x128xf32, #tpu.memory_space<vmem>>, %arg5: memref<128x128xf32, #tpu.memory_space<vmem>>) attributes {dimension_semantics = [#tpu.dimension_semantics<parallel>], iteration_bounds = array<i64: 4>, scalar_prefetch = 0 : i64, scratch_operands = 0 : i64, tpu.core_type = #tpu.core_type<tc>, window_params = [{transform_indices = @transform_0, window_bounds = array<i64: 128, 128>}, {pipeline_mode = #tpu.pipeline_mode<synchronous>, transform_indices = @transform_1, window_bounds = array<i64: 2, 128>}, {pipeline_mode = #tpu.pipeline_mode<synchronous>, transform_indices = @transform_2, window_bounds = array<i64: 1, 128>}, {pipeline_mode = #tpu.pipeline_mode<synchronous>, transform_indices = @transform_3, window_bounds = array<i64: 1, 128>}, {transform_indices = @transform_4, window_bounds = array<i64: 128, 128>}]} {
    %c0 = arith.constant 0 : index
    %c0_0 = arith.constant 0 : index
    %0 = vector.load %arg2[%c0, %c0_0] : memref<2x128xf32, #tpu.memory_space<vmem>>, vector<1x128xf32>
    %c1 = arith.constant 1 : index
    %c0_1 = arith.constant 0 : index
    %1 = vector.load %arg2[%c1, %c0_1] : memref<2x128xf32, #tpu.memory_space<vmem>>, vector<1x128xf32>
    %cst = arith.constant 9.99999974E-6 : f32
    %2 = vector.broadcast %cst : f32 to vector<1x128xf32>
    %3 = arith.addf %1, %2 : vector<1x128xf32>
    %4 = math.rsqrt %3 : vector<1x128xf32>
    %c0_2 = arith.constant 0 : index
    %c0_3 = arith.constant 0 : index
    %5 = vector.load %arg1[%c0_2, %c0_3] : memref<128x128xf32, #tpu.memory_space<vmem>>, vector<128x128xf32>
    %6 = vector.broadcast %0 : vector<1x128xf32> to vector<128x128xf32>
    %7 = arith.subf %5, %6 : vector<128x128xf32>
    %c0_4 = arith.constant 0 : index
    %c0_5 = arith.constant 0 : index
    %8 = vector.load %arg3[%c0_4, %c0_5] : memref<1x128xf32, #tpu.memory_space<vmem>>, vector<1x128xf32>
    %9 = arith.mulf %4, %8 : vector<1x128xf32>
    %10 = vector.broadcast %9 : vector<1x128xf32> to vector<128x128xf32>
    %11 = arith.mulf %7, %10 : vector<128x128xf32>
    %c0_6 = arith.constant 0 : index
    %c0_7 = arith.constant 0 : index
    %12 = vector.load %arg4[%c0_6, %c0_7] : memref<1x128xf32, #tpu.memory_space<vmem>>, vector<1x128xf32>
    %13 = vector.broadcast %12 : vector<1x128xf32> to vector<128x128xf32>
    %14 = arith.addf %11, %13 : vector<128x128xf32>
    %c0_8 = arith.constant 0 : index
    %c0_9 = arith.constant 0 : index
    %15 = vector.load %arg5[%c0_8, %c0_9] : memref<128x128xf32, #tpu.memory_space<vmem>>, vector<128x128xf32>
    tpu.vector_store %arg5[%c0_8, %c0_9], %14 {strides = array<i32>} : memref<128x128xf32, #tpu.memory_space<vmem>>, vector<128x128xf32>,
    return
  }
  func.func @transform_0(%arg0: i32) -> (i32, i32) {
    %c0_i32 = arith.constant 0 : i32
    %c0_i32_0 = arith.constant 0 : i32
    return %arg0, %c0_i32 : i32, i32
  }
  func.func @transform_1(%arg0: i32) -> (i32, i32) {
    %c0_i32 = arith.constant 0 : i32
    %c0_i32_0 = arith.constant 0 : i32
    %c0_i32_1 = arith.constant 0 : i32
    return %c0_i32, %c0_i32_0 : i32, i32
  }
  func.func @transform_2(%arg0: i32) -> (i32, i32) {
    %c0_i32 = arith.constant 0 : i32
    %c0_i32_0 = arith.constant 0 : i32
    %c0_i32_1 = arith.constant 0 : i32
    return %c0_i32, %c0_i32_0 : i32, i32
  }
  func.func @transform_3(%arg0: i32) -> (i32, i32) {
    %c0_i32 = arith.constant 0 : i32
    %c0_i32_0 = arith.constant 0 : i32
    %c0_i32_1 = arith.constant 0 : i32
    return %c0_i32, %c0_i32_0 : i32, i32
  }
  func.func @transform_4(%arg0: i32) -> (i32, i32) {
    %c0_i32 = arith.constant 0 : i32
    %c0_i32_0 = arith.constant 0 : i32
    return %arg0, %c0_i32 : i32, i32
  }
}

module attributes {stable_mosaic.version = 11 : i64} {
  func.func @_act_matmul_kernel(%arg0: i32, %arg1: i32, %arg2: i32, %arg3: memref<1x128x128xbf16, #tpu.memory_space<vmem>>, %arg4: memref<1x128x128xbf16, #tpu.memory_space<vmem>>, %arg5: memref<1x128x128xf32, #tpu.memory_space<vmem>>, %arg6: memref<128x128xf32, #tpu.memory_space<vmem>>) attributes {dimension_semantics = [#tpu.dimension_semantics<parallel>, #tpu.dimension_semantics<parallel>, #tpu.dimension_semantics<arbitrary>], iteration_bounds = array<i64: 4, 1, 1>, scalar_prefetch = 0 : i64, scratch_operands = 1 : i64, tpu.core_type = #tpu.core_type<tc>, window_params = [{transform_indices = @transform_0, window_bounds = array<i64: 1, 128, 128>}, {transform_indices = @transform_1, window_bounds = array<i64: 1, 128, 128>}, {transform_indices = @transform_2, window_bounds = array<i64: 1, 128, 128>}]} {
    %c0_i32 = arith.constant 0 : i32
    %0 = arith.cmpi eq, %arg2, %c0_i32 : i32
    %1 = arith.extui %0 : i1 to i32
    %c0_i32_0 = arith.constant 0 : i32
    %2 = arith.cmpi ne, %1, %c0_i32_0 : i32
    scf.if %2 {
      %cst_14 = arith.constant 0.000000e+00 : f32
      %21 = vector.broadcast %cst_14 : f32 to vector<128x128xf32>
      %c0_15 = arith.constant 0 : index
      %c0_16 = arith.constant 0 : index
      %22 = vector.load %arg6[%c0_15, %c0_16] : memref<128x128xf32, #tpu.memory_space<vmem>>, vector<128x128xf32>
      tpu.vector_store %arg6[%c0_15, %c0_16], %21 {strides = array<i32>} : memref<128x128xf32, #tpu.memory_space<vmem>>, vector<128x128xf32>,
    } else {
    }
    %c0 = arith.constant 0 : index
    %c0_1 = arith.constant 0 : index
    %c0_2 = arith.constant 0 : index
    %3 = vector.load %arg3[%c0, %c0_1, %c0_2] : memref<1x128x128xbf16, #tpu.memory_space<vmem>>, vector<1x128x128xbf16>
    %4 = vector.shape_cast %3 : vector<1x128x128xbf16> to vector<128x128xbf16>
    %5 = arith.extf %4 : vector<128x128xbf16> to vector<128x128xf32>
    %cst = arith.constant 0.000000e+00 : f32
    %6 = vector.broadcast %cst : f32 to vector<128x128xf32>
    %7 = arith.cmpf ogt, %5, %6 : vector<128x128xf32>
    %cst_3 = arith.constant 0.000000e+00 : f32
    %8 = vector.broadcast %cst_3 : f32 to vector<128x128xf32>
    %9 = arith.mulf %8, %5 : vector<128x128xf32>
    %10 = arith.select %7, %5, %9 : vector<128x128xi1>, vector<128x128xf32>
    %c0_4 = arith.constant 0 : index
    %c0_5 = arith.constant 0 : index
    %11 = vector.load %arg6[%c0_4, %c0_5] : memref<128x128xf32, #tpu.memory_space<vmem>>, vector<128x128xf32>
    %12 = arith.truncf %10 : vector<128x128xf32> to vector<128x128xbf16>
    %c0_6 = arith.constant 0 : index
    %c0_7 = arith.constant 0 : index
    %c0_8 = arith.constant 0 : index
    %13 = vector.load %arg4[%c0_6, %c0_7, %c0_8] : memref<1x128x128xbf16, #tpu.memory_space<vmem>>, vector<1x128x128xbf16>
    %14 = vector.shape_cast %13 : vector<1x128x128xbf16> to vector<128x128xbf16>
    %cst_9 = arith.constant dense<0.000000e+00> : vector<128x128xf32>
    %15 = tpu.matmul %12, %14, %cst_9 {dimension_numbers = #tpu.dot_dimension_numbers<[1], [0], [0], [1], [0, 0, 1, 1], [], []>} : vector<128x128xbf16>, vector<128x128xbf16>, vector<128x128xf32> -> vector<128x128xf32>
    %16 = arith.addf %11, %15 : vector<128x128xf32>
    %c0_10 = arith.constant 0 : index
    %c0_11 = arith.constant 0 : index
    %17 = vector.load %arg6[%c0_10, %c0_11] : memref<128x128xf32, #tpu.memory_space<vmem>>, vector<128x128xf32>
    tpu.vector_store %arg6[%c0_10, %c0_11], %16 {strides = array<i32>} : memref<128x128xf32, #tpu.memory_space<vmem>>, vector<128x128xf32>,
    %c0_i32_12 = arith.constant 0 : i32
    %18 = arith.cmpi eq, %arg2, %c0_i32_12 : i32
    %19 = arith.extui %18 : i1 to i32
    %c0_i32_13 = arith.constant 0 : i32
    %20 = arith.cmpi ne, %19, %c0_i32_13 : i32
    scf.if %20 {
      %c0_14 = arith.constant 0 : index
      %c0_15 = arith.constant 0 : index
      %21 = vector.load %arg6[%c0_14, %c0_15] : memref<128x128xf32, #tpu.memory_space<vmem>>, vector<128x128xf32>
      %c0_16 = arith.constant 0 : index
      %c0_17 = arith.constant 0 : index
      %c0_18 = arith.constant 0 : index
      %22 = vector.load %arg5[%c0_16, %c0_17, %c0_18] : memref<1x128x128xf32, #tpu.memory_space<vmem>>, vector<1x128x128xf32>
      %23 = vector.shape_cast %22 : vector<1x128x128xf32> to vector<128x128xf32>
      %24 = vector.shape_cast %21 : vector<128x128xf32> to vector<1x128x128xf32>
      tpu.vector_store %arg5[%c0_16, %c0_17, %c0_18], %24 {strides = array<i32>} : memref<1x128x128xf32, #tpu.memory_space<vmem>>, vector<1x128x128xf32>,
    } else {
    }
    return
  }
  func.func @transform_0(%arg0: i32, %arg1: i32, %arg2: i32) -> (i32, i32, i32) {
    %c0_i32 = arith.constant 0 : i32
    return %arg0, %arg1, %arg2 : i32, i32, i32
  }
  func.func @transform_1(%arg0: i32, %arg1: i32, %arg2: i32) -> (i32, i32, i32) {
    %c0_i32 = arith.constant 0 : i32
    %c0_i32_0 = arith.constant 0 : i32
    return %arg0, %arg2, %c0_i32 : i32, i32, i32
  }
  func.func @transform_2(%arg0: i32, %arg1: i32, %arg2: i32) -> (i32, i32, i32) {
    %c0_i32 = arith.constant 0 : i32
    %c0_i32_0 = arith.constant 0 : i32
    return %arg0, %arg1, %c0_i32 : i32, i32, i32
  }
}

</mosaic_0001>

<llo_original>
// kernel: unet_innermost_forward.4
$region0: #{unet_innermost_forward.4}
  #allocation0 [shape = 'u32[]', space=smem, size = 0x4, offset = 0x4, fixed_abs, tag = 'smem constant byte address 0x4 - core index']
  #allocation1 [shape = 'u32[144,128]{1,0:T(1,128)}', space=vmem, size = 0x12000, scoped, tag = 'internal scratch']
  #allocation2 [shape = 'f32[128,128]{1,0:T(8,128)}', space=vmem, size = 0x10000, scoped, tag = 'scratch operand']
  %s0 = inlined_call_operand.vmem [shape: bf16[1,128,128], index: 0, kind: input, shape index: {}]
  %s1 = inlined_call_operand.vmem [shape: bf16[1,128,128], index: 1, kind: input, shape index: {}]
  %s2 = inlined_call_operand.vmem [shape: f32[1,128,128], index: 2, kind: output, shape index: {}]
  %s3 = sld [smem:[#allocation0]]
  $region26: #{unet_innermost_forward.4} parent=0
    _
  %s5 = ssub.s32 1, %s3
  %s6 = scalar_select 0, %s5, %s3
  // Predicated region
  $region2: #{unet_innermost_forward.4} parent=0 // pred_check
    _
  $region3: #{unet_innermost_forward.4} parent=0 // pred_check_branch
    %8 = sbr.rel (0) target = $region5
  $region4: #{unet_innermost_forward.4} parent=0 // pred_region
    _
  $region5: #{unet_innermost_forward.4} parent=0 // pred_fallthru
    _
  // Predicated region
  $region6: #{unet_innermost_forward.4} parent=0 // pred_check
    _
  $region7: #{unet_innermost_forward.4} parent=0 // pred_check_branch
    %10 = sbr.rel (0) target = $region9
  $region8: #{unet_innermost_forward.4} parent=0 // pred_region
    _
  $region9: #{unet_innermost_forward.4} parent=0 // pred_fallthru
    _
  %p12 = scmp.eq.s32.totalorder 0, 0
  // Predicated region
  $region10: #{unet_innermost_forward.4} parent=0 // pred_check
    %p13 = pneg %p12
  $region11: #{unet_innermost_forward.4} parent=0 // pred_check_branch
    %15 = sbr.rel (%p13) target = $region13
  $region12: #{unet_innermost_forward.4} parent=0 // pred_region
    %16 = vst [vmem:[#allocation2] sm:$0xff] 0.0
    %17 = vst [vmem:[#allocation2 + $0x8] sm:$0xff] 0.0
    %18 = vst [vmem:[#allocation2 + $0x10] sm:$0xff] 0.0
    %19 = vst [vmem:[#allocation2 + $0x18] sm:$0xff] 0.0
    %20 = vst [vmem:[#allocation2 + $0x20] sm:$0xff] 0.0
    %21 = vst [vmem:[#allocation2 + $0x28] sm:$0xff] 0.0
    %22 = vst [vmem:[#allocation2 + $0x30] sm:$0xff] 0.0
    %23 = vst [vmem:[#allocation2 + $0x38] sm:$0xff] 0.0
    %24 = vst [vmem:[#allocation2 + $0x40] sm:$0xff] 0.0
    %25 = vst [vmem:[#allocation2 + $0x48] sm:$0xff] 0.0
    %26 = vst [vmem:[#allocation2 + $0x50] sm:$0xff] 0.0
    %27 = vst [vmem:[#allocation2 + $0x58] sm:$0xff] 0.0
    %28 = vst [vmem:[#allocation2 + $0x60] sm:$0xff] 0.0
    %29 = vst [vmem:[#allocation2 + $0x68] sm:$0xff] 0.0
    %30 = vst [vmem:[#allocation2 + $0x70] sm:$0xff] 0.0
    %31 = vst [vmem:[#allocation2 + $0x78] sm:$0xff] 0.0
  $region13: #{unet_innermost_forward.4} parent=0 // pred_fallthru
    _
  %v32 = vld [vmem:[%s0] sm:$0xf]
  %v33 = vld [vmem:[%s0 + $0x4] sm:$0xf]
  %v34 = vld [vmem:[%s0 + $0x8] sm:$0xf]
  %v35 = vld [vmem:[%s0 + $0xc] sm:$0xf]
  %v36 = vld [vmem:[%s0 + $0x10] sm:$0xf]
  %v37 = vld [vmem:[%s0 + $0x14] sm:$0xf]
  %v38 = vld [vmem:[%s0 + $0x18] sm:$0xf]
  %v39 = vld [vmem:[%s0 + $0x1c] sm:$0xf]
  %v40 = vld [vmem:[%s0 + $0x20] sm:$0xf]
  %v41 = vld [vmem:[%s0 + $0x24] sm:$0xf]
  %v42 = vld [vmem:[%s0 + $0x28] sm:$0xf]
  %v43 = vld [vmem:[%s0 + $0x2c] sm:$0xf]
  %v44 = vld [vmem:[%s0 + $0x30] sm:$0xf]
  %v45 = vld [vmem:[%s0 + $0x34] sm:$0xf]
  %v46 = vld [vmem:[%s0 + $0x38] sm:$0xf]
  %v47 = vld [vmem:[%s0 + $0x3c] sm:$0xf]
  %v48 = vunpack.c.l.bf16 %v32
  %v49 = vunpack.c.l.bf16 %v33
  %v50 = vunpack.c.l.bf16 %v34
  %v51 = vunpack.c.l.bf16 %v35
  %v52 = vunpack.c.l.bf16 %v36
  %v53 = vunpack.c.l.bf16 %v37
  %v54 = vunpack.c.l.bf16 %v38
  %v55 = vunpack.c.l.bf16 %v39
  %v56 = vunpack.c.l.bf16 %v40
  %v57 = vunpack.c.l.bf16 %v41
  %v58 = vunpack.c.l.bf16 %v42
  %v59 = vunpack.c.l.bf16 %v43
  %v60 = vunpack.c.l.bf16 %v44
  %v61 = vunpack.c.l.bf16 %v45
  %v62 = vunpack.c.l.bf16 %v46
  %v63 = vunpack.c.l.bf16 %v47
  %vm64 = vcmp.gt.f32.partialorder %v48, 0.0
  %vm65 = vcmp.gt.f32.partialorder %v49, 0.0
  %vm66 = vcmp.gt.f32.partialorder %v50, 0.0
  %vm67 = vcmp.gt.f32.partialorder %v51, 0.0
  %vm68 = vcmp.gt.f32.partialorder %v52, 0.0
  %vm69 = vcmp.gt.f32.partialorder %v53, 0.0
  %vm70 = vcmp.gt.f32.partialorder %v54, 0.0
  %vm71 = vcmp.gt.f32.partialorder %v55, 0.0
  %vm72 = vcmp.gt.f32.partialorder %v56, 0.0
  %vm73 = vcmp.gt.f32.partialorder %v57, 0.0
  %vm74 = vcmp.gt.f32.partialorder %v58, 0.0
  %vm75 = vcmp.gt.f32.partialorder %v59, 0.0
  %vm76 = vcmp.gt.f32.partialorder %v60, 0.0
  %vm77 = vcmp.gt.f32.partialorder %v61, 0.0
  %vm78 = vcmp.gt.f32.partialorder %v62, 0.0
  %vm79 = vcmp.gt.f32.partialorder %v63, 0.0
  %v80 = vmul.f32 %v48, 0.2
  %v81 = vmul.f32 %v49, 0.2
  %v82 = vmul.f32 %v50, 0.2
  %v83 = vmul.f32 %v51, 0.2
  %v84 = vmul.f32 %v52, 0.2
  %v85 = vmul.f32 %v53, 0.2
  %v86 = vmul.f32 %v54, 0.2
  %v87 = vmul.f32 %v55, 0.2
  %v88 = vmul.f32 %v56, 0.2
  %v89 = vmul.f32 %v57, 0.2
  %v90 = vmul.f32 %v58, 0.2
  %v91 = vmul.f32 %v59, 0.2
  %v92 = vmul.f32 %v60, 0.2
  %v93 = vmul.f32 %v61, 0.2
  %v94 = vmul.f32 %v62, 0.2
  %v95 = vmul.f32 %v63, 0.2
  %v96 = vsel %vm64, %v48, %v80
  %v97 = vsel %vm65, %v49, %v81
  %v98 = vsel %vm66, %v50, %v82
  %v99 = vsel %vm67, %v51, %v83
  %v100 = vsel %vm68, %v52, %v84
  %v101 = vsel %vm69, %v53, %v85
  %v102 = vsel %vm70, %v54, %v86
  %v103 = vsel %vm71, %v55, %v87
  %v104 = vsel %vm72, %v56, %v88
  %v105 = vsel %vm73, %v57, %v89
  %v106 = vsel %vm74, %v58, %v90
  %v107 = vsel %vm75, %v59, %v91
  %v108 = vsel %vm76, %v60, %v92
  %v109 = vsel %vm77, %v61, %v93
  %v110 = vsel %vm78, %v62, %v94
  %v111 = vsel %vm79, %v63, %v95
  %v112 = vld [vmem:[#allocation2] sm:$0xff]
  %v113 = vld [vmem:[#allocation2 + $0x8] sm:$0xff]
  %v114 = vld [vmem:[#allocation2 + $0x10] sm:$0xff]
  %v115 = vld [vmem:[#allocation2 + $0x18] sm:$0xff]
  %v116 = vld [vmem:[#allocation2 + $0x20] sm:$0xff]
  %v117 = vld [vmem:[#allocation2 + $0x28] sm:$0xff]
  %v118 = vld [vmem:[#allocation2 + $0x30] sm:$0xff]
  %v119 = vld [vmem:[#allocation2 + $0x38] sm:$0xff]
  %v120 = vld [vmem:[#allocation2 + $0x40] sm:$0xff]
  %v121 = vld [vmem:[#allocation2 + $0x48] sm:$0xff]
  %v122 = vld [vmem:[#allocation2 + $0x50] sm:$0xff]
  %v123 = vld [vmem:[#allocation2 + $0x58] sm:$0xff]
  %v124 = vld [vmem:[#allocation2 + $0x60] sm:$0xff]
  %v125 = vld [vmem:[#allocation2 + $0x68] sm:$0xff]
  %v126 = vld [vmem:[#allocation2 + $0x70] sm:$0xff]
  %v127 = vld [vmem:[#allocation2 + $0x78] sm:$0xff]
  %v128 = vpack.c.bf16 %v97, %v96
  %v129 = vpack.c.bf16 %v99, %v98
  %v130 = vpack.c.bf16 %v101, %v100
  %v131 = vpack.c.bf16 %v103, %v102
  %v132 = vpack.c.bf16 %v105, %v104
  %v133 = vpack.c.bf16 %v107, %v106
  %v134 = vpack.c.bf16 %v109, %v108
  %v135 = vpack.c.bf16 %v111, %v110
  %v136 = vld [vmem:[%s1] sm:$0xf]
  %v137 = vld [vmem:[%s1 + $0x4] sm:$0xf]
  %v138 = vld [vmem:[%s1 + $0x8] sm:$0xf]
  %v139 = vld [vmem:[%s1 + $0xc] sm:$0xf]
  %v140 = vld [vmem:[%s1 + $0x10] sm:$0xf]
  %v141 = vld [vmem:[%s1 + $0x14] sm:$0xf]
  %v142 = vld [vmem:[%s1 + $0x18] sm:$0xf]
  %v143 = vld [vmem:[%s1 + $0x1c] sm:$0xf]
  %v144 = vld [vmem:[%s1 + $0x20] sm:$0xf]
  %v145 = vld [vmem:[%s1 + $0x24] sm:$0xf]
  %v146 = vld [vmem:[%s1 + $0x28] sm:$0xf]
  %v147 = vld [vmem:[%s1 + $0x2c] sm:$0xf]
  %v148 = vld [vmem:[%s1 + $0x30] sm:$0xf]
  %v149 = vld [vmem:[%s1 + $0x34] sm:$0xf]
  %v150 = vld [vmem:[%s1 + $0x38] sm:$0xf]
  %v151 = vld [vmem:[%s1 + $0x3c] sm:$0xf]
  %v168 = vunpack.c.l.b16 %v136
  %v169 = vunpack.c.l.b16 %v137
  %v170 = vunpack.c.l.b16 %v138
  %v171 = vunpack.c.l.b16 %v139
  %v172 = vunpack.c.l.b16 %v140
  %v173 = vunpack.c.l.b16 %v141
  %v174 = vunpack.c.l.b16 %v142
  %v175 = vunpack.c.l.b16 %v143
  %v176 = vunpack.c.l.b16 %v144
  %v177 = vunpack.c.l.b16 %v145
  %v178 = vunpack.c.l.b16 %v146
  %v179 = vunpack.c.l.b16 %v147
  %v180 = vunpack.c.l.b16 %v148
  %v181 = vunpack.c.l.b16 %v149
  %v182 = vunpack.c.l.b16 %v150
  %v183 = vunpack.c.l.b16 %v151
  %v184 = vpack.c.b16 %v169, %v168
  %v185 = vpack.c.b16 %v171, %v170
  %v186 = vpack.c.b16 %v173, %v172
  %v187 = vpack.c.b16 %v175, %v174
  %v188 = vpack.c.b16 %v177, %v176
  %v189 = vpack.c.b16 %v179, %v178
  %v190 = vpack.c.b16 %v181, %v180
  %v191 = vpack.c.b16 %v183, %v182
  %200 = vmatprep.subr.bf16.mxu0 0
  %201 = vmatpush1.bf16.msra.mxu0 %v191
  %202 = vmatprep.subr.bf16.mxu0 0
  %203 = vmatpush1.bf16.msra.mxu0 %v190
  %204 = vmatprep.subr.bf16.mxu0 0
  %205 = vmatpush1.bf16.msra.mxu0 %v189
  %206 = vmatprep.subr.bf16.mxu0 0
  %207 = vmatpush1.bf16.msra.mxu0 %v188
  %208 = vmatprep.subr.bf16.mxu0 0
  %209 = vmatpush1.bf16.msra.mxu0 %v187
  %210 = vmatprep.subr.bf16.mxu0 0
  %211 = vmatpush1.bf16.msra.mxu0 %v186
  %212 = vmatprep.subr.bf16.mxu0 0
  %213 = vmatpush1.bf16.msra.mxu0 %v185
  %214 = vmatprep.subr.bf16.mxu0 0
  %215 = vmatpush1.bf16.msra.mxu0 %v184
  %216 = vmatprep.subr.bf16.mxu0 0
  %217 = vmatpush2.bf16.msra.mxu0 0
  %218 = vmatprep.subr.bf16.mxu0 0
  %219 = vmatpush2.bf16.msra.mxu0 0
  %220 = vmatprep.subr.bf16.mxu0 0
  %221 = vmatpush2.bf16.msra.mxu0 0
  %222 = vmatprep.subr.bf16.mxu0 0
  %223 = vmatpush2.bf16.msra.mxu0 0
  %224 = vmatprep.subr.bf16.mxu0 0
  %225 = vmatpush2.bf16.msra.mxu0 0
  %226 = vmatprep.subr.bf16.mxu0 0
  %227 = vmatpush2.bf16.msra.mxu0 0
  %228 = vmatprep.subr.bf16.mxu0 0
  %229 = vmatpush2.bf16.msra.mxu0 0
  %230 = vmatprep.subr.bf16.mxu0 0
  %231 = vmatpush2.bf16.msra.mxu0 0
  %232 = vmatprep.mubr.bf16.mxu0 0
  %233 = vmatmul.mubr.bf16.gmra.mxu0 %v128
  %v234 = vpop.f32.mrf.mxu0
  %v235 = vadd.f32 0.0, %v234
  %v236 = vpop.f32.mrf.mxu0
  %v237 = vpop.f32.mrf.mxu0
  %v238 = vadd.f32 0.0, %v237
  %v239 = vpop.f32.mrf.mxu0
  %240 = vmatprep.mubr.bf16.mxu0 0
  %241 = vmatmul.mubr.bf16.gmra.mxu0 %v129
  %v242 = vpop.f32.mrf.mxu0
  %v243 = vadd.f32 0.0, %v242
  %v244 = vpop.f32.mrf.mxu0
  %v245 = vpop.f32.mrf.mxu0
  %v246 = vadd.f32 0.0, %v245
  %v247 = vpop.f32.mrf.mxu0
  %248 = vmatprep.mubr.bf16.mxu0 0
  %249 = vmatmul.mubr.bf16.gmra.mxu0 %v130
  %v250 = vpop.f32.mrf.mxu0
  %v251 = vadd.f32 0.0, %v250
  %v252 = vpop.f32.mrf.mxu0
  %v253 = vpop.f32.mrf.mxu0
  %v254 = vadd.f32 0.0, %v253
  %v255 = vpop.f32.mrf.mxu0
  %256 = vmatprep.mubr.bf16.mxu0 0
  %257 = vmatmul.mubr.bf16.gmra.mxu0 %v131
  %v258 = vpop.f32.mrf.mxu0
  %v259 = vadd.f32 0.0, %v258
  %v260 = vpop.f32.mrf.mxu0
  %v261 = vpop.f32.mrf.mxu0
  %v262 = vadd.f32 0.0, %v261
  %v263 = vpop.f32.mrf.mxu0
  %264 = vmatprep.mubr.bf16.mxu0 0
  %265 = vmatmul.mubr.bf16.gmra.mxu0 %v132
  %v266 = vpop.f32.mrf.mxu0
  %v267 = vadd.f32 0.0, %v266
  %v268 = vpop.f32.mrf.mxu0
  %v269 = vpop.f32.mrf.mxu0
  %v270 = vadd.f32 0.0, %v269
  %v271 = vpop.f32.mrf.mxu0
  %272 = vmatprep.mubr.bf16.mxu0 0
  %273 = vmatmul.mubr.bf16.gmra.mxu0 %v133
  %v274 = vpop.f32.mrf.mxu0
  %v275 = vadd.f32 0.0, %v274
  %v276 = vpop.f32.mrf.mxu0
  %v277 = vpop.f32.mrf.mxu0
  %v278 = vadd.f32 0.0, %v277
  %v279 = vpop.f32.mrf.mxu0
  %280 = vmatprep.mubr.bf16.mxu0 0
  %281 = vmatmul.mubr.bf16.gmra.mxu0 %v134
  %v282 = vpop.f32.mrf.mxu0
  %v283 = vadd.f32 0.0, %v282
  %v284 = vpop.f32.mrf.mxu0
  %v285 = vpop.f32.mrf.mxu0
  %v286 = vadd.f32 0.0, %v285
  %v287 = vpop.f32.mrf.mxu0
  %288 = vmatprep.mubr.bf16.mxu0 0
  %289 = vmatmul.mubr.bf16.gmra.mxu0 %v135
  %v290 = vpop.f32.mrf.mxu0
  %v291 = vadd.f32 0.0, %v290
  %v292 = vpop.f32.mrf.mxu0
  %v293 = vpop.f32.mrf.mxu0
  %v294 = vadd.f32 0.0, %v293
  %v295 = vpop.f32.mrf.mxu0
  %296 = vdwg.mxu0
  %v297 = vadd.f32 %v112, %v235
  %v298 = vadd.f32 %v113, %v238
  %v299 = vadd.f32 %v114, %v243
  %v300 = vadd.f32 %v115, %v246
  %v301 = vadd.f32 %v116, %v251
  %v302 = vadd.f32 %v117, %v254
  %v303 = vadd.f32 %v118, %v259
  %v304 = vadd.f32 %v119, %v262
  %v305 = vadd.f32 %v120, %v267
  %v306 = vadd.f32 %v121, %v270
  %v307 = vadd.f32 %v122, %v275
  %v308 = vadd.f32 %v123, %v278
  %v309 = vadd.f32 %v124, %v283
  %v310 = vadd.f32 %v125, %v286
  %v311 = vadd.f32 %v126, %v291
  %v312 = vadd.f32 %v127, %v294
  %313 = vst [vmem:[#allocation2] sm:$0xff] %v297
  %314 = vst [vmem:[#allocation2 + $0x8] sm:$0xff] %v298
  %315 = vst [vmem:[#allocation2 + $0x10] sm:$0xff] %v299
  %316 = vst [vmem:[#allocation2 + $0x18] sm:$0xff] %v300
  %317 = vst [vmem:[#allocation2 + $0x20] sm:$0xff] %v301
  %318 = vst [vmem:[#allocation2 + $0x28] sm:$0xff] %v302
  %319 = vst [vmem:[#allocation2 + $0x30] sm:$0xff] %v303
  %320 = vst [vmem:[#allocation2 + $0x38] sm:$0xff] %v304
  %321 = vst [vmem:[#allocation2 + $0x40] sm:$0xff] %v305
  %322 = vst [vmem:[#allocation2 + $0x48] sm:$0xff] %v306
  %323 = vst [vmem:[#allocation2 + $0x50] sm:$0xff] %v307
  %324 = vst [vmem:[#allocation2 + $0x58] sm:$0xff] %v308
  %325 = vst [vmem:[#allocation2 + $0x60] sm:$0xff] %v309
  %326 = vst [vmem:[#allocation2 + $0x68] sm:$0xff] %v310
  %327 = vst [vmem:[#allocation2 + $0x70] sm:$0xff] %v311
  %328 = vst [vmem:[#allocation2 + $0x78] sm:$0xff] %v312
  // Predicated region
  $region14: #{unet_innermost_forward.4} parent=0 // pred_check
    %p329 = pneg %p12
  $region15: #{unet_innermost_forward.4} parent=0 // pred_check_branch
    %331 = sbr.rel (%p329) target = $region17
  $region16: #{unet_innermost_forward.4} parent=0 // pred_region
    %v332 = vld [vmem:[#allocation2] sm:$0xff]
    %v333 = vld [vmem:[#allocation2 + $0x8] sm:$0xff]
    %v334 = vld [vmem:[#allocation2 + $0x10] sm:$0xff]
    %v335 = vld [vmem:[#allocation2 + $0x18] sm:$0xff]
    %v336 = vld [vmem:[#allocation2 + $0x20] sm:$0xff]
    %v337 = vld [vmem:[#allocation2 + $0x28] sm:$0xff]
    %v338 = vld [vmem:[#allocation2 + $0x30] sm:$0xff]
    %v339 = vld [vmem:[#allocation2 + $0x38] sm:$0xff]
    %v340 = vld [vmem:[#allocation2 + $0x40] sm:$0xff]
    %v341 = vld [vmem:[#allocation2 + $0x48] sm:$0xff]
    %v342 = vld [vmem:[#allocation2 + $0x50] sm:$0xff]
    %v343 = vld [vmem:[#allocation2 + $0x58] sm:$0xff]
    %v344 = vld [vmem:[#allocation2 + $0x60] sm:$0xff]
    %v345 = vld [vmem:[#allocation2 + $0x68] sm:$0xff]
    %v346 = vld [vmem:[#allocation2 + $0x70] sm:$0xff]
    %v347 = vld [vmem:[#allocation2 + $0x78] sm:$0xff]
    %348 = vst [vmem:[%s2] sm:$0xff] %v332
    %349 = vst [vmem:[%s2 + $0x8] sm:$0xff] %v333
    %350 = vst [vmem:[%s2 + $0x10] sm:$0xff] %v334
    %351 = vst [vmem:[%s2 + $0x18] sm:$0xff] %v335
    %352 = vst [vmem:[%s2 + $0x20] sm:$0xff] %v336
    %353 = vst [vmem:[%s2 + $0x28] sm:$0xff] %v337
    %354 = vst [vmem:[%s2 + $0x30] sm:$0xff] %v338
    %355 = vst [vmem:[%s2 + $0x38] sm:$0xff] %v339
    %356 = vst [vmem:[%s2 + $0x40] sm:$0xff] %v340
    %357 = vst [vmem:[%s2 + $0x48] sm:$0xff] %v341
    %358 = vst [vmem:[%s2 + $0x50] sm:$0xff] %v342
    %359 = vst [vmem:[%s2 + $0x58] sm:$0xff] %v343
    %360 = vst [vmem:[%s2 + $0x60] sm:$0xff] %v344
    %361 = vst [vmem:[%s2 + $0x68] sm:$0xff] %v345
    %362 = vst [vmem:[%s2 + $0x70] sm:$0xff] %v346
    %363 = vst [vmem:[%s2 + $0x78] sm:$0xff] %v347
  $region17: #{unet_innermost_forward.4} parent=0 // pred_fallthru
    _
  // Predicated region
  $region18: #{unet_innermost_forward.4} parent=0 // pred_check
    _
  $region19: #{unet_innermost_forward.4} parent=0 // pred_check_branch
    %365 = sbr.rel (0) target = $region21
  $region20: #{unet_innermost_forward.4} parent=0 // pred_region
    _
  $region21: #{unet_innermost_forward.4} parent=0 // pred_fallthru
    _
  // Predicated region
  $region22: #{unet_innermost_forward.4} parent=0 // pred_check
    _
  $region23: #{unet_innermost_forward.4} parent=0 // pred_check_branch
    %367 = sbr.rel (0) target = $region25
  $region24: #{unet_innermost_forward.4} parent=0 // pred_region
    _
  $region25: #{unet_innermost_forward.4} parent=0 // pred_fallthru
    _

// kernel: unet_innermost_forward.6
$region0: #{unet_innermost_forward.6}
  #allocation0 [shape = 'u32[]', space=smem, size = 0x4, offset = 0x4, fixed_abs, tag = 'smem constant byte address 0x4 - core index']
  #allocation1 [shape = 'u32[144,128]{1,0:T(1,128)}', space=vmem, size = 0x12000, scoped, tag = 'internal scratch']
  %s0 = inlined_call_operand.vmem [shape: f32[512,128], index: 0, kind: input, shape index: {}]
  %s1 = inlined_call_operand.vmem [shape: f32[2,128], index: 1, kind: output, shape index: {}]
  %s2 = sld [smem:[#allocation0]]
  $region45: #{unet_innermost_forward.6} parent=0
    _
  %s4 = ssub.s32 1, %s2
  %s5 = scalar_select 0, %s4, %s2
  loop: start=0, step=1, limit=6
  $region2: #{unet_innermost_forward.6} parent=0 // loop_pre_header
    _
  $region3: #{unet_innermost_forward.6} parent=0 // loop_header
    %s7 = sphi 0, %s11
    %p8 = scmp.ge.s32.totalorder %s7, 6
    %s17 = sphi 0, %s19
    %s20 = sphi 0, %s17
    %s21 = sphi 0, %s20
    %s37 = sphi 0, %s21
    %s41 = sphi 0, %s41
    %s43 = sphi 0, %s41
    %s44 = sphi 0, %s43
    %s58 = sphi 0, %s44
  $region4: #{unet_innermost_forward.6} parent=0 // loop_header_branch
    %10 = sbr.rel (%p8) target = $region8
  $region5: #{unet_innermost_forward.6} parent=0 // loop_body
    %s12 = ssub.s32 %s7, 1
    %s13 = ssub.s32 %s7, 2
    %s14 = sadd.s32 %s7, 1
    %s15 = ssub.s32 %s7, %s14
    %p16 = scmp.eq.s32.totalorder %s15, 0
    %s18 = sadd.s32 %s17, 1
    %s19 = scalar_select %p16, %s17, %s18
    %p22 = pneg %p16
    %p23 = scmp.eq.s32.totalorder %s7, 3
    %p24 = por %p22, %p23
    %p25 = scmp.ne.s32.totalorder %s17, %s20
    %p26 = scmp.eq.s32.totalorder %s7, 0
    %p27 = por %p25, %p26
    %p28 = scmp.ne.s32.totalorder %s17, %s20
    %p29 = scmp.eq.s32.totalorder %s12, 3
    %p30 = por %p28, %p29
    %p31 = scmp.ne.s32.totalorder %s20, %s21
    %p32 = scmp.eq.s32.totalorder %s12, 0
    %p33 = por %p31, %p32
    %p34 = scmp.ne.s32.totalorder %s20, %s21
    %p35 = scmp.eq.s32.totalorder %s13, 3
    %p36 = por %p34, %p35
    %p38 = scmp.ne.s32.totalorder %s21, %s37
    %p39 = scmp.eq.s32.totalorder %s13, 0
    %p40 = por %p38, %p39
    %s42 = sadd.s32 %s41, 1
    %p45 = scmp.eq.s32.totalorder %s7, 3
    %p46 = scmp.ne.s32.totalorder %s41, %s43
    %p47 = scmp.eq.s32.totalorder %s7, 0
    %p48 = por %p46, %p47
    %p49 = scmp.ne.s32.totalorder %s41, %s43
    %p50 = scmp.eq.s32.totalorder %s12, 3
    %p51 = por %p49, %p50
    %p52 = scmp.ne.s32.totalorder %s43, %s44
    %p53 = scmp.eq.s32.totalorder %s12, 0
    %p54 = por %p52, %p53
    %p55 = scmp.ne.s32.totalorder %s43, %s44
    %p56 = scmp.eq.s32.totalorder %s13, 3
    %p57 = por %p55, %p56
    %p59 = scmp.ne.s32.totalorder %s44, %s58
    %p60 = scmp.eq.s32.totalorder %s13, 0
    %p61 = por %p59, %p60
    %p62 = scmp.le.s32.totalorder 1, %s7
    %p63 = scmp.lt.s32.totalorder %s7, 5
    %p64 = pnand %p62, %p63
    %p65 = pneg %p64
    // Predicated region
    $region9: #{unet_innermost_forward.6} parent=5 // pred_check
      _
    $region10: #{unet_innermost_forward.6} parent=5 // pred_check_branch
      %67 = sbr.rel (%p64) target = $region12
    $region11: #{unet_innermost_forward.6} parent=5 // pred_region
      %s68 = ssub.s32 %s7, 1
    $region12: #{unet_innermost_forward.6} parent=5 // pred_fallthru
      _
    %p69 = scmp.lt.s32.totalorder %s7, 4
    // Predicated region
    $region13: #{unet_innermost_forward.6} parent=5 // pred_check
      %p70 = pneg %p69
    $region14: #{unet_innermost_forward.6} parent=5 // pred_check_branch
      %72 = sbr.rel (%p70) target = $region16
    $region15: #{unet_innermost_forward.6} parent=5 // pred_region
      // Predicated region
      $region17: #{unet_innermost_forward.6} parent=15 // pred_check
        %p73 = pneg %p27
      $region18: #{unet_innermost_forward.6} parent=15 // pred_check_branch
        %75 = sbr.rel (%p73) target = $region20
      $region19: #{unet_innermost_forward.6} parent=15 // pred_region
        %s76 = smul.u32 16, %s7
        %p77 = scmp.lt.s32.totalorder %s76, 63
        %s78 = scalar_select %p77, %s76, 63
        %s79 = smul.addr %s78, 8
        %s80 = scalar_lea.vmem %s0, %s79
        %s81 = smul.u32 16, %s7
      $region20: #{unet_innermost_forward.6} parent=15 // pred_fallthru
        _
    $region16: #{unet_innermost_forward.6} parent=5 // pred_fallthru
      _
    %p82 = scmp.le.s32.totalorder 1, %s7
    %p83 = scmp.lt.s32.totalorder %s7, 5
    %p84 = pnand %p82, %p83
    %p85 = pneg %p84
    // Predicated region
    $region21: #{unet_innermost_forward.6} parent=5 // pred_check
      _
    $region22: #{unet_innermost_forward.6} parent=5 // pred_check_branch
      %87 = sbr.rel (%p84) target = $region24
    $region23: #{unet_innermost_forward.6} parent=5 // pred_region
      %s88 = ssub.s32 %s7, 1
      %s89 = smul.u32 16, %s12
      %p90 = scmp.lt.s32.totalorder %s89, 63
      %s91 = scalar_select %p90, %s89, 63
      %s92 = smul.addr %s91, 8
      %s93 = scalar_lea.vmem %s0, %s92
      %p94 = pneg %p33
      %p95 = pneg %p30
      %p96 = pneg %p54
      %p97 = pneg %p51
      %s98 = smul.u32 16, %s12
      %p99 = scmp.lt.s32.totalorder %s98, 63
      %s100 = scalar_select %p99, %s98, 63
      %s101 = smul.addr %s100, 8
      %s102 = scalar_lea.vmem %s0, %s101
      %s103 = smul.u32 16, %s12
      %p104 = scmp.eq.s32.totalorder %s12, 0
      // Predicated region
      $region25: #{unet_innermost_forward.6} parent=23 // pred_check
        %p105 = pneg %p104
      $region26: #{unet_innermost_forward.6} parent=23 // pred_check_branch
        %107 = sbr.rel (%p105) target = $region28
      $region27: #{unet_innermost_forward.6} parent=23 // pred_region
        %108 = vst [vmem:[%s1] sm:$0x3] 0.0
      $region28: #{unet_innermost_forward.6} parent=23 // pred_fallthru
        _
      %v109 = vld [vmem:[%s102] sm:$0xff]
      %v110 = vld [vmem:[%s102 + $0x8] sm:$0xff]
      %v111 = vld [vmem:[%s102 + $0x10] sm:$0xff]
      %v112 = vld [vmem:[%s102 + $0x18] sm:$0xff]
      %v113 = vld [vmem:[%s102 + $0x20] sm:$0xff]
      %v114 = vld [vmem:[%s102 + $0x28] sm:$0xff]
      %v115 = vld [vmem:[%s102 + $0x30] sm:$0xff]
      %v116 = vld [vmem:[%s102 + $0x38] sm:$0xff]
      %v117 = vld [vmem:[%s102 + $0x40] sm:$0xff]
      %v118 = vld [vmem:[%s102 + $0x48] sm:$0xff]
      %v119 = vld [vmem:[%s102 + $0x50] sm:$0xff]
      %v120 = vld [vmem:[%s102 + $0x58] sm:$0xff]
      %v121 = vld [vmem:[%s102 + $0x60] sm:$0xff]
      %v122 = vld [vmem:[%s102 + $0x68] sm:$0xff]
      %v123 = vld [vmem:[%s102 + $0x70] sm:$0xff]
      %v124 = vld [vmem:[%s102 + $0x78] sm:$0xff]
      %v125 = vld [vmem:[%s1] sm:$0x1]
      %v126 = vadd.f32 %v109, %v110
      %v127 = vadd.f32 %v126, %v111
      %v128 = vadd.f32 %v127, %v112
      %v129 = vadd.f32 %v128, %v113
      %v130 = vadd.f32 %v129, %v114
      %v131 = vadd.f32 %v130, %v115
      %v132 = vadd.f32 %v131, %v116
      %v133 = vadd.f32 %v132, %v117
      %v134 = vadd.f32 %v133, %v118
      %v135 = vadd.f32 %v134, %v119
      %v136 = vadd.f32 %v135, %v120
      %v137 = vadd.f32 %v136, %v121
      %v138 = vadd.f32 %v137, %v122
      %v139 = vadd.f32 %v138, %v123
      %v140 = vadd.f32 %v139, %v124
      %v141 = vrot.slane %v140, 4
      %v142 = vadd.f32 %v140, %v141
      %v143 = vrot.slane %v142, 2
      %v144 = vadd.f32 %v142, %v143
      %v145 = vrot.slane %v144, 1
      %v146 = vadd.f32 %v144, %v145
      %v147 = vadd.f32 %v125, %v146
      %148 = vst [vmem:[%s1] sm:$0x1] %v147
      %v149 = vld [vmem:[%s1 + $0x1] sm:$0x1]
      %v150 = vmul.f32 %v109, %v109
      %v151 = vmul.f32 %v110, %v110
      %v152 = vmul.f32 %v111, %v111
      %v153 = vmul.f32 %v112, %v112
      %v154 = vmul.f32 %v113, %v113
      %v155 = vmul.f32 %v114, %v114
      %v156 = vmul.f32 %v115, %v115
      %v157 = vmul.f32 %v116, %v116
      %v158 = vmul.f32 %v117, %v117
      %v159 = vmul.f32 %v118, %v118
      %v160 = vmul.f32 %v119, %v119
      %v161 = vmul.f32 %v120, %v120
      %v162 = vmul.f32 %v121, %v121
      %v163 = vmul.f32 %v122, %v122
      %v164 = vmul.f32 %v123, %v123
      %v165 = vmul.f32 %v124, %v124
      %v166 = vadd.f32 %v150, %v151
      %v167 = vadd.f32 %v166, %v152
      %v168 = vadd.f32 %v167, %v153
      %v169 = vadd.f32 %v168, %v154
      %v170 = vadd.f32 %v169, %v155
      %v171 = vadd.f32 %v170, %v156
      %v172 = vadd.f32 %v171, %v157
      %v173 = vadd.f32 %v172, %v158
      %v174 = vadd.f32 %v173, %v159
      %v175 = vadd.f32 %v174, %v160
      %v176 = vadd.f32 %v175, %v161
      %v177 = vadd.f32 %v176, %v162
      %v178 = vadd.f32 %v177, %v163
      %v179 = vadd.f32 %v178, %v164
      %v180 = vadd.f32 %v179, %v165
      %v181 = vrot.slane %v180, 4
      %v182 = vadd.f32 %v180, %v181
      %v183 = vrot.slane %v182, 2
      %v184 = vadd.f32 %v182, %v183
      %v185 = vrot.slane %v184, 1
      %v186 = vadd.f32 %v184, %v185
      %v187 = vadd.f32 %v149, %v186
      %188 = vst [vmem:[%s1 + $0x1] sm:$0x1] %v187
      %p189 = scmp.eq.s32.totalorder %s12, 3
      // Predicated region
      $region29: #{unet_innermost_forward.6} parent=23 // pred_check
        %p190 = pneg %p189
      $region30: #{unet_innermost_forward.6} parent=23 // pred_check_branch
        %192 = sbr.rel (%p190) target = $region32
      $region31: #{unet_innermost_forward.6} parent=23 // pred_region
        %v193 = vld [vmem:[%s1] sm:$0x1]
        %v194 = vmul.f32 %v193, 0.001953125
        %v195 = vld [vmem:[%s1 + $0x1] sm:$0x1]
        %v196 = vmul.f32 %v195, 0.001953125
        %v197 = vmul.f32 %v194, %v194
        %v198 = vsub.f32 %v196, %v197
        %v199 = vmax.f32 %v198, 0.0
        %200 = vst [vmem:[%s1] sm:$0x1] %v194
        %201 = vst [vmem:[%s1 + $0x1] sm:$0x1] %v199
      $region32: #{unet_innermost_forward.6} parent=23 // pred_fallthru
        _
      // Predicated region
      $region33: #{unet_innermost_forward.6} parent=23 // pred_check
        %p202 = pneg %p51
      $region34: #{unet_innermost_forward.6} parent=23 // pred_check_branch
        %204 = sbr.rel (%p202) target = $region36
      $region35: #{unet_innermost_forward.6} parent=23 // pred_region
        _
      $region36: #{unet_innermost_forward.6} parent=23 // pred_fallthru
        _
      // Predicated region
      $region37: #{unet_innermost_forward.6} parent=23 // pred_check
        %p205 = pneg %p51
      $region38: #{unet_innermost_forward.6} parent=23 // pred_check_branch
        %207 = sbr.rel (%p205) target = $region40
      $region39: #{unet_innermost_forward.6} parent=23 // pred_region
        _
      $region40: #{unet_innermost_forward.6} parent=23 // pred_fallthru
        _
    $region24: #{unet_innermost_forward.6} parent=5 // pred_fallthru
      _
    %p208 = scmp.le.s32.totalorder 2, %s7
    // Predicated region
    $region41: #{unet_innermost_forward.6} parent=5 // pred_check
      %p209 = pneg %p208
    $region42: #{unet_innermost_forward.6} parent=5 // pred_check_branch
      %211 = sbr.rel (%p209) target = $region44
    $region43: #{unet_innermost_forward.6} parent=5 // pred_region
      %s212 = ssub.s32 %s7, 2
    $region44: #{unet_innermost_forward.6} parent=5 // pred_fallthru
      _
  $region6: #{unet_innermost_forward.6} parent=0 // loop_footer
    %s11 = sadd.s32 1, %s7
  $region7: #{unet_innermost_forward.6} parent=0 // loop_footer_branch
    %6 = sbr.rel target = $region3
  $region8: #{unet_innermost_forward.6} parent=0 // loop_exit
    _

// kernel: unet_innermost_forward.7
$region0: #{unet_innermost_forward.7}
  #allocation0 [shape = 'u32[]', space=smem, size = 0x4, offset = 0x4, fixed_abs, tag = 'smem constant byte address 0x4 - core index']
  #allocation1 [shape = 'u32[144,128]{1,0:T(1,128)}', space=vmem, size = 0x12000, scoped, tag = 'internal scratch']
  %s0 = inlined_call_operand.vmem [shape: f32[512,128], index: 0, kind: input, shape index: {}]
  %s1 = inlined_call_operand.vmem [shape: f32[2,128], index: 1, kind: input, shape index: {}]
  %s2 = inlined_call_operand.vmem [shape: f32[1,128], index: 2, kind: input, shape index: {}]
  %s3 = inlined_call_operand.vmem [shape: f32[1,128], index: 3, kind: input, shape index: {}]
  %s4 = inlined_call_operand.vmem [shape: f32[512,128], index: 4, kind: output, shape index: {}]
  %s5 = sld [smem:[#allocation0]]
  $region49: #{unet_innermost_forward.7} parent=0
    _
  %s7 = ssub.s32 1, %s5
  %s8 = scalar_select 0, %s7, %s5
  loop: start=0, step=1, limit=6
  $region2: #{unet_innermost_forward.7} parent=0 // loop_pre_header
    _
  $region3: #{unet_innermost_forward.7} parent=0 // loop_header
    %s10 = sphi 0, %s14
    %p11 = scmp.ge.s32.totalorder %s10, 6
    %s20 = sphi 0, %s22
    %s23 = sphi 0, %s20
    %s24 = sphi 0, %s23
    %s40 = sphi 0, %s24
    %s44 = sphi 0, %s44
    %s46 = sphi 0, %s44
    %s47 = sphi 0, %s46
    %s61 = sphi 0, %s47
    %s65 = sphi 0, %s65
    %s67 = sphi 0, %s65
    %s68 = sphi 0, %s67
    %s82 = sphi 0, %s68
    %s86 = sphi 0, %s86
    %s88 = sphi 0, %s86
    %s89 = sphi 0, %s88
    %s103 = sphi 0, %s89
    %s109 = sphi 0, %s111
    %s112 = sphi 0, %s109
    %s113 = sphi 0, %s112
    %s129 = sphi 0, %s113
  $region4: #{unet_innermost_forward.7} parent=0 // loop_header_branch
    %13 = sbr.rel (%p11) target = $region8
  $region5: #{unet_innermost_forward.7} parent=0 // loop_body
    %s15 = ssub.s32 %s10, 1
    %s16 = ssub.s32 %s10, 2
    %s17 = sadd.s32 %s10, 1
    %s18 = ssub.s32 %s10, %s17
    %p19 = scmp.eq.s32.totalorder %s18, 0
    %s21 = sadd.s32 %s20, 1
    %s22 = scalar_select %p19, %s20, %s21
    %p25 = pneg %p19
    %p26 = scmp.eq.s32.totalorder %s10, 3
    %p27 = por %p25, %p26
    %p28 = scmp.ne.s32.totalorder %s20, %s23
    %p29 = scmp.eq.s32.totalorder %s10, 0
    %p30 = por %p28, %p29
    %p31 = scmp.ne.s32.totalorder %s20, %s23
    %p32 = scmp.eq.s32.totalorder %s15, 3
    %p33 = por %p31, %p32
    %p34 = scmp.ne.s32.totalorder %s23, %s24
    %p35 = scmp.eq.s32.totalorder %s15, 0
    %p36 = por %p34, %p35
    %p37 = scmp.ne.s32.totalorder %s23, %s24
    %p38 = scmp.eq.s32.totalorder %s16, 3
    %p39 = por %p37, %p38
    %p41 = scmp.ne.s32.totalorder %s24, %s40
    %p42 = scmp.eq.s32.totalorder %s16, 0
    %p43 = por %p41, %p42
    %s45 = sadd.s32 %s44, 1
    %p48 = scmp.eq.s32.totalorder %s10, 3
    %p49 = scmp.ne.s32.totalorder %s44, %s46
    %p50 = scmp.eq.s32.totalorder %s10, 0
    %p51 = por %p49, %p50
    %p52 = scmp.ne.s32.totalorder %s44, %s46
    %p53 = scmp.eq.s32.totalorder %s15, 3
    %p54 = por %p52, %p53
    %p55 = scmp.ne.s32.totalorder %s46, %s47
    %p56 = scmp.eq.s32.totalorder %s15, 0
    %p57 = por %p55, %p56
    %p58 = scmp.ne.s32.totalorder %s46, %s47
    %p59 = scmp.eq.s32.totalorder %s16, 3
    %p60 = por %p58, %p59
    %p62 = scmp.ne.s32.totalorder %s47, %s61
    %p63 = scmp.eq.s32.totalorder %s16, 0
    %p64 = por %p62, %p63
    %s66 = sadd.s32 %s65, 1
    %p69 = scmp.eq.s32.totalorder %s10, 3
    %p70 = scmp.ne.s32.totalorder %s65, %s67
    %p71 = scmp.eq.s32.totalorder %s10, 0
    %p72 = por %p70, %p71
    %p73 = scmp.ne.s32.totalorder %s65, %s67
    %p74 = scmp.eq.s32.totalorder %s15, 3
    %p75 = por %p73, %p74
    %p76 = scmp.ne.s32.totalorder %s67, %s68
    %p77 = scmp.eq.s32.totalorder %s15, 0
    %p78 = por %p76, %p77
    %p79 = scmp.ne.s32.totalorder %s67, %s68
    %p80 = scmp.eq.s32.totalorder %s16, 3
    %p81 = por %p79, %p80
    %p83 = scmp.ne.s32.totalorder %s68, %s82
    %p84 = scmp.eq.s32.totalorder %s16, 0
    %p85 = por %p83, %p84
    %s87 = sadd.s32 %s86, 1
    %p90 = scmp.eq.s32.totalorder %s10, 3
    %p91 = scmp.ne.s32.totalorder %s86, %s88
    %p92 = scmp.eq.s32.totalorder %s10, 0
    %p93 = por %p91, %p92
    %p94 = scmp.ne.s32.totalorder %s86, %s88
    %p95 = scmp.eq.s32.totalorder %s15, 3
    %p96 = por %p94, %p95
    %p97 = scmp.ne.s32.totalorder %s88, %s89
    %p98 = scmp.eq.s32.totalorder %s15, 0
    %p99 = por %p97, %p98
    %p100 = scmp.ne.s32.totalorder %s88, %s89
    %p101 = scmp.eq.s32.totalorder %s16, 3
    %p102 = por %p100, %p101
    %p104 = scmp.ne.s32.totalorder %s89, %s103
    %p105 = scmp.eq.s32.totalorder %s16, 0
    %p106 = por %p104, %p105
    %s107 = ssub.s32 %s10, %s17
    %p108 = scmp.eq.s32.totalorder %s107, 0
    %s110 = sadd.s32 %s109, 1
    %s111 = scalar_select %p108, %s109, %s110
    %p114 = pneg %p108
    %p115 = scmp.eq.s32.totalorder %s10, 3
    %p116 = por %p114, %p115
    %p117 = scmp.ne.s32.totalorder %s109, %s112
    %p118 = scmp.eq.s32.totalorder %s10, 0
    %p119 = por %p117, %p118
    %p120 = scmp.ne.s32.totalorder %s109, %s112
    %p121 = scmp.eq.s32.totalorder %s15, 3
    %p122 = por %p120, %p121
    %p123 = scmp.ne.s32.totalorder %s112, %s113
    %p124 = scmp.eq.s32.totalorder %s15, 0
    %p125 = por %p123, %p124
    %p126 = scmp.ne.s32.totalorder %s112, %s113
    %p127 = scmp.eq.s32.totalorder %s16, 3
    %p128 = por %p126, %p127
    %p130 = scmp.ne.s32.totalorder %s113, %s129
    %p131 = scmp.eq.s32.totalorder %s16, 0
    %p132 = por %p130, %p131
    %p133 = scmp.le.s32.totalorder 1, %s10
    %p134 = scmp.lt.s32.totalorder %s10, 5
    %p135 = pnand %p133, %p134
    %p136 = pneg %p135
    // Predicated region
    $region9: #{unet_innermost_forward.7} parent=5 // pred_check
      _
    $region10: #{unet_innermost_forward.7} parent=5 // pred_check_branch
      %138 = sbr.rel (%p135) target = $region12
    $region11: #{unet_innermost_forward.7} parent=5 // pred_region
      %s139 = ssub.s32 %s10, 1
      // Predicated region
      $region13: #{unet_innermost_forward.7} parent=11 // pred_check
        %p140 = pneg %p57
      $region14: #{unet_innermost_forward.7} parent=11 // pred_check_branch
        %142 = sbr.rel (%p140) target = $region16
      $region15: #{unet_innermost_forward.7} parent=11 // pred_region
        _
      $region16: #{unet_innermost_forward.7} parent=11 // pred_fallthru
        _
      // Predicated region
      $region17: #{unet_innermost_forward.7} parent=11 // pred_check
        %p143 = pneg %p78
      $region18: #{unet_innermost_forward.7} parent=11 // pred_check_branch
        %145 = sbr.rel (%p143) target = $region20
      $region19: #{unet_innermost_forward.7} parent=11 // pred_region
        _
      $region20: #{unet_innermost_forward.7} parent=11 // pred_fallthru
        _
      // Predicated region
      $region21: #{unet_innermost_forward.7} parent=11 // pred_check
        %p146 = pneg %p99
      $region22: #{unet_innermost_forward.7} parent=11 // pred_check_branch
        %148 = sbr.rel (%p146) target = $region24
      $region23: #{unet_innermost_forward.7} parent=11 // pred_region
        _
      $region24: #{unet_innermost_forward.7} parent=11 // pred_fallthru
        _
    $region12: #{unet_innermost_forward.7} parent=5 // pred_fallthru
      _
    %p149 = scmp.lt.s32.totalorder %s10, 4
    // Predicated region
    $region25: #{unet_innermost_forward.7} parent=5 // pred_check
      %p150 = pneg %p149
    $region26: #{unet_innermost_forward.7} parent=5 // pred_check_branch
      %152 = sbr.rel (%p150) target = $region28
    $region27: #{unet_innermost_forward.7} parent=5 // pred_region
      // Predicated region
      $region29: #{unet_innermost_forward.7} parent=27 // pred_check
        %p153 = pneg %p30
      $region30: #{unet_innermost_forward.7} parent=27 // pred_check_branch
        %155 = sbr.rel (%p153) target = $region32
      $region31: #{unet_innermost_forward.7} parent=27 // pred_region
        %s156 = smul.u32 16, %s10
        %p157 = scmp.lt.s32.totalorder %s156, 63
        %s158 = scalar_select %p157, %s156, 63
        %s159 = smul.addr %s158, 8
        %s160 = scalar_lea.vmem %s0, %s159
        %s161 = smul.u32 16, %s10
      $region32: #{unet_innermost_forward.7} parent=27 // pred_fallthru
        _
    $region28: #{unet_innermost_forward.7} parent=5 // pred_fallthru
      _
    %p162 = scmp.le.s32.totalorder 1, %s10
    %p163 = scmp.lt.s32.totalorder %s10, 5
    %p164 = pnand %p162, %p163
    %p165 = pneg %p164
    // Predicated region
    $region33: #{unet_innermost_forward.7} parent=5 // pred_check
      _
    $region34: #{unet_innermost_forward.7} parent=5 // pred_check_branch
      %167 = sbr.rel (%p164) target = $region36
    $region35: #{unet_innermost_forward.7} parent=5 // pred_region
      %s168 = ssub.s32 %s10, 1
      %s169 = smul.u32 16, %s15
      %p170 = scmp.lt.s32.totalorder %s169, 63
      %s171 = scalar_select %p170, %s169, 63
      %s172 = smul.addr %s171, 8
      %s173 = scalar_lea.vmem %s0, %s172
      %p174 = pneg %p36
      %p175 = pneg %p33
      %p176 = pneg %p57
      %p177 = pneg %p54
      %p178 = pneg %p78
      %p179 = pneg %p75
      %p180 = pneg %p99
      %p181 = pneg %p96
      %p182 = pneg %p125
      %p183 = pneg %p122
      %s184 = smul.u32 16, %s15
      %p185 = scmp.lt.s32.totalorder %s184, 63
      %s186 = scalar_select %p185, %s184, 63
      %s187 = smul.addr %s186, 8
      %s188 = scalar_lea.vmem %s4, %s187
      %s189 = smul.u32 16, %s15
      %p190 = scmp.lt.s32.totalorder %s189, 63
      %s191 = scalar_select %p190, %s189, 63
      %s192 = smul.addr %s191, 8
      %s193 = scalar_lea.vmem %s0, %s192
      %s194 = smul.u32 16, %s15
      %s195 = smul.u32 16, %s15
      %p196 = scmp.lt.s32.totalorder %s195, 63
      %s197 = scalar_select %p196, %s195, 63
      %s198 = smul.addr %s197, 8
      %s199 = scalar_lea.vmem %s4, %s198
      %s200 = smul.u32 16, %s15
      %v201 = vld [vmem:[%s1] sm:$0x1]
      %v202 = vld [vmem:[%s1 + $0x1] sm:$0x1]
      %v203 = vadd.f32 %v202, 1e-05
      %v204 = vrsqrt.pop %v203
      %v205 = vld [vmem:[%s193] sm:$0xff]
      %v206 = vld [vmem:[%s193 + $0x8] sm:$0xff]
      %v207 = vld [vmem:[%s193 + $0x10] sm:$0xff]
      %v208 = vld [vmem:[%s193 + $0x18] sm:$0xff]
      %v209 = vld [vmem:[%s193 + $0x20] sm:$0xff]
      %v210 = vld [vmem:[%s193 + $0x28] sm:$0xff]
      %v211 = vld [vmem:[%s193 + $0x30] sm:$0xff]
      %v212 = vld [vmem:[%s193 + $0x38] sm:$0xff]
      %v213 = vld [vmem:[%s193 + $0x40] sm:$0xff]
      %v214 = vld [vmem:[%s193 + $0x48] sm:$0xff]
      %v215 = vld [vmem:[%s193 + $0x50] sm:$0xff]
      %v216 = vld [vmem:[%s193 + $0x58] sm:$0xff]
      %v217 = vld [vmem:[%s193 + $0x60] sm:$0xff]
      %v218 = vld [vmem:[%s193 + $0x68] sm:$0xff]
      %v219 = vld [vmem:[%s193 + $0x70] sm:$0xff]
      %v220 = vld [vmem:[%s193 + $0x78] sm:$0xff]
      %v221 = vlaneseq
      %v222 = vshrl.u32 %v221, 7
      %v223 = vsub.s32 0, %v222
      %v224 = vrot.slane %v201, %v223
      %v225 = vsub.f32 %v205, %v224
      %v226 = vsub.f32 %v206, %v224
      %v227 = vsub.f32 %v207, %v224
      %v228 = vsub.f32 %v208, %v224
      %v229 = vsub.f32 %v209, %v224
      %v230 = vsub.f32 %v210, %v224
      %v231 = vsub.f32 %v211, %v224
      %v232 = vsub.f32 %v212, %v224
      %v233 = vsub.f32 %v213, %v224
      %v234 = vsub.f32 %v214, %v224
      %v235 = vsub.f32 %v215, %v224
      %v236 = vsub.f32 %v216, %v224
      %v237 = vsub.f32 %v217, %v224
      %v238 = vsub.f32 %v218, %v224
      %v239 = vsub.f32 %v219, %v224
      %v240 = vsub.f32 %v220, %v224
      %v241 = vld [vmem:[%s2] sm:$0x1]
      %v242 = vmul.f32 %v204, %v241
      %v243 = vlaneseq
      %v244 = vshrl.u32 %v243, 7
      %v245 = vsub.s32 0, %v244
      %v246 = vrot.slane %v242, %v245
      %v247 = vmul.f32 %v225, %v246
      %v248 = vmul.f32 %v226, %v246
      %v249 = vmul.f32 %v227, %v246
      %v250 = vmul.f32 %v228, %v246
      %v251 = vmul.f32 %v229, %v246
      %v252 = vmul.f32 %v230, %v246
      %v253 = vmul.f32 %v231, %v246
      %v254 = vmul.f32 %v232, %v246
      %v255 = vmul.f32 %v233, %v246
      %v256 = vmul.f32 %v234, %v246
      %v257 = vmul.f32 %v235, %v246
      %v258 = vmul.f32 %v236, %v246
      %v259 = vmul.f32 %v237, %v246
      %v260 = vmul.f32 %v238, %v246
      %v261 = vmul.f32 %v239, %v246
      %v262 = vmul.f32 %v240, %v246
      %v263 = vld [vmem:[%s3] sm:$0x1]
      %v265 = vlaneseq
      %v266 = vshrl.u32 %v265, 7
      %v267 = vsub.s32 0, %v266
      %v268 = vrot.slane %v263, %v267
      %v270 = vadd.f32 %v247, %v268
      %v271 = vadd.f32 %v248, %v268
      %v272 = vadd.f32 %v249, %v268
      %v273 = vadd.f32 %v250, %v268
      %v274 = vadd.f32 %v251, %v268
      %v275 = vadd.f32 %v252, %v268
      %v276 = vadd.f32 %v253, %v268
      %v277 = vadd.f32 %v254, %v268
      %v278 = vadd.f32 %v255, %v268
      %v279 = vadd.f32 %v256, %v268
      %v280 = vadd.f32 %v257, %v268
      %v281 = vadd.f32 %v258, %v268
      %v282 = vadd.f32 %v259, %v268
      %v283 = vadd.f32 %v260, %v268
      %v284 = vadd.f32 %v261, %v268
      %v285 = vadd.f32 %v262, %v268
      %286 = vst [vmem:[%s199] sm:$0xff] %v270
      %287 = vst [vmem:[%s199 + $0x8] sm:$0xff] %v271
      %288 = vst [vmem:[%s199 + $0x10] sm:$0xff] %v272
      %289 = vst [vmem:[%s199 + $0x18] sm:$0xff] %v273
      %290 = vst [vmem:[%s199 + $0x20] sm:$0xff] %v274
      %291 = vst [vmem:[%s199 + $0x28] sm:$0xff] %v275
      %292 = vst [vmem:[%s199 + $0x30] sm:$0xff] %v276
      %293 = vst [vmem:[%s199 + $0x38] sm:$0xff] %v277
      %294 = vst [vmem:[%s199 + $0x40] sm:$0xff] %v278
      %295 = vst [vmem:[%s199 + $0x48] sm:$0xff] %v279
      %296 = vst [vmem:[%s199 + $0x50] sm:$0xff] %v280
      %297 = vst [vmem:[%s199 + $0x58] sm:$0xff] %v281
      %298 = vst [vmem:[%s199 + $0x60] sm:$0xff] %v282
      %299 = vst [vmem:[%s199 + $0x68] sm:$0xff] %v283
      %300 = vst [vmem:[%s199 + $0x70] sm:$0xff] %v284
      %301 = vst [vmem:[%s199 + $0x78] sm:$0xff] %v285
      %s302 = smul.u32 16, %s15
      %p303 = scmp.lt.s32.totalorder %s302, 63
      %s304 = scalar_select %p303, %s302, 63
      %s305 = smul.addr %s304, 8
      %s306 = scalar_lea.vmem %s4, %s305
      // Predicated region
      $region37: #{unet_innermost_forward.7} parent=35 // pred_check
        %p307 = pneg %p122
      $region38: #{unet_innermost_forward.7} parent=35 // pred_check_branch
        %309 = sbr.rel (%p307) target = $region40
      $region39: #{unet_innermost_forward.7} parent=35 // pred_region
        %s310 = smul.u32 16, %s15
      $region40: #{unet_innermost_forward.7} parent=35 // pred_fallthru
        _
    $region36: #{unet_innermost_forward.7} parent=5 // pred_fallthru
      _
    %p311 = scmp.le.s32.totalorder 2, %s10
    // Predicated region
    $region41: #{unet_innermost_forward.7} parent=5 // pred_check
      %p312 = pneg %p311
    $region42: #{unet_innermost_forward.7} parent=5 // pred_check_branch
      %314 = sbr.rel (%p312) target = $region44
    $region43: #{unet_innermost_forward.7} parent=5 // pred_region
      %s315 = ssub.s32 %s10, 2
      // Predicated region
      $region45: #{unet_innermost_forward.7} parent=43 // pred_check
        %p316 = pneg %p128
      $region46: #{unet_innermost_forward.7} parent=43 // pred_check_branch
        %318 = sbr.rel (%p316) target = $region48
      $region47: #{unet_innermost_forward.7} parent=43 // pred_region
        %s319 = smul.u32 16, %s16
        %p320 = scmp.lt.s32.totalorder %s319, 63
        %s321 = scalar_select %p320, %s319, 63
        %s322 = smul.addr %s321, 8
        %s323 = scalar_lea.vmem %s4, %s322
      $region48: #{unet_innermost_forward.7} parent=43 // pred_fallthru
        _
    $region44: #{unet_innermost_forward.7} parent=5 // pred_fallthru
      _
  $region6: #{unet_innermost_forward.7} parent=0 // loop_footer
    %s14 = sadd.s32 1, %s10
  $region7: #{unet_innermost_forward.7} parent=0 // loop_footer_branch
    %9 = sbr.rel target = $region3
  $region8: #{unet_innermost_forward.7} parent=0 // loop_exit
    _

// kernel: unet_innermost_forward.5
$region0: #{unet_innermost_forward.5}
  #allocation0 [shape = 'u32[]', space=smem, size = 0x4, offset = 0x4, fixed_abs, tag = 'smem constant byte address 0x4 - core index']
  #allocation1 [shape = 'u32[144,128]{1,0:T(1,128)}', space=vmem, size = 0x12000, scoped, tag = 'internal scratch']
  #allocation2 [shape = 'f32[128,128]{1,0:T(8,128)}', space=vmem, size = 0x10000, scoped, tag = 'scratch operand']
  %s0 = inlined_call_operand.vmem [shape: bf16[4,128,128], index: 0, kind: input, shape index: {}]
  %s1 = inlined_call_operand.vmem [shape: bf16[4,128,128], index: 1, kind: input, shape index: {}]
  %s2 = inlined_call_operand.vmem [shape: f32[4,128,128], index: 2, kind: output, shape index: {}]
  %s3 = sld [smem:[#allocation0]]
  $region49: #{unet_innermost_forward.5} parent=0
    _
  %s5 = ssub.s32 1, %s3
  %s6 = scalar_select 0, %s5, %s3
  loop: start=0, step=1, limit=6
  $region2: #{unet_innermost_forward.5} parent=0 // loop_pre_header
    _
  $region3: #{unet_innermost_forward.5} parent=0 // loop_header
    %s8 = sphi 0, %s12
    %p9 = scmp.ge.s32.totalorder %s8, 6
    %s15 = sphi 0, %s34
    %s16 = sphi 0, %s30
    %s17 = sphi 0, %s26
    %s18 = sphi 0, %s15
    %s19 = sphi 0, %s16
    %s20 = sphi 0, %s17
    %s21 = sphi 0, %s18
    %s22 = sphi 0, %s19
    %s23 = sphi 0, %s20
    %s41 = sphi 0, %s43
    %s44 = sphi 0, %s41
    %s45 = sphi 0, %s44
    %s61 = sphi 0, %s45
    %s69 = sphi 0, %s71
    %s72 = sphi 0, %s69
    %s73 = sphi 0, %s72
    %s89 = sphi 0, %s73
    %s97 = sphi 0, %s99
    %s100 = sphi 0, %s97
    %s101 = sphi 0, %s100
    %s117 = sphi 0, %s101
  $region4: #{unet_innermost_forward.5} parent=0 // loop_header_branch
    %11 = sbr.rel (%p9) target = $region8
  $region5: #{unet_innermost_forward.5} parent=0 // loop_body
    %s13 = ssub.s32 %s8, 1
    %s14 = ssub.s32 %s8, 2
    %s24 = sadd.s32 1, %s17
    %p25 = scmp.ge.s32.totalorder %s24, 1
    %s26 = scalar_select %p25, 0, %s24
    %s27 = sadd.s32 1, %s16
    %s28 = scalar_select %p25, %s27, %s16
    %p29 = scmp.ge.s32.totalorder %s28, 1
    %s30 = scalar_select %p29, 0, %s28
    %s31 = sadd.s32 1, %s15
    %s32 = scalar_select %p29, %s31, %s15
    %p33 = scmp.ge.s32.totalorder %s32, 4
    %s34 = scalar_select %p33, 0, %s32
    %s35 = ssub.s32 %s15, %s34
    %s36 = ssub.s32 %s16, %s30
    %s37 = sor.u32 %s35, %s36
    %s38 = ssub.s32 %s17, %s26
    %s39 = sor.u32 %s37, %s38
    %p40 = scmp.eq.s32.totalorder %s39, 0
    %s42 = sadd.s32 %s41, 1
    %s43 = scalar_select %p40, %s41, %s42
    %p46 = pneg %p40
    %p47 = scmp.eq.s32.totalorder %s8, 3
    %p48 = por %p46, %p47
    %p49 = scmp.ne.s32.totalorder %s41, %s44
    %p50 = scmp.eq.s32.totalorder %s8, 0
    %p51 = por %p49, %p50
    %p52 = scmp.ne.s32.totalorder %s41, %s44
    %p53 = scmp.eq.s32.totalorder %s13, 3
    %p54 = por %p52, %p53
    %p55 = scmp.ne.s32.totalorder %s44, %s45
    %p56 = scmp.eq.s32.totalorder %s13, 0
    %p57 = por %p55, %p56
    %p58 = scmp.ne.s32.totalorder %s44, %s45
    %p59 = scmp.eq.s32.totalorder %s14, 3
    %p60 = por %p58, %p59
    %p62 = scmp.ne.s32.totalorder %s45, %s61
    %p63 = scmp.eq.s32.totalorder %s14, 0
    %p64 = por %p62, %p63
    %s65 = ssub.s32 %s15, %s34
    %s66 = ssub.s32 %s17, %s26
    %s67 = sor.u32 %s65, %s66
    %p68 = scmp.eq.s32.totalorder %s67, 0
    %s70 = sadd.s32 %s69, 1
    %s71 = scalar_select %p68, %s69, %s70
    %p74 = pneg %p68
    %p75 = scmp.eq.s32.totalorder %s8, 3
    %p76 = por %p74, %p75
    %p77 = scmp.ne.s32.totalorder %s69, %s72
    %p78 = scmp.eq.s32.totalorder %s8, 0
    %p79 = por %p77, %p78
    %p80 = scmp.ne.s32.totalorder %s69, %s72
    %p81 = scmp.eq.s32.totalorder %s13, 3
    %p82 = por %p80, %p81
    %p83 = scmp.ne.s32.totalorder %s72, %s73
    %p84 = scmp.eq.s32.totalorder %s13, 0
    %p85 = por %p83, %p84
    %p86 = scmp.ne.s32.totalorder %s72, %s73
    %p87 = scmp.eq.s32.totalorder %s14, 3
    %p88 = por %p86, %p87
    %p90 = scmp.ne.s32.totalorder %s73, %s89
    %p91 = scmp.eq.s32.totalorder %s14, 0
    %p92 = por %p90, %p91
    %s93 = ssub.s32 %s15, %s34
    %s94 = ssub.s32 %s16, %s30
    %s95 = sor.u32 %s93, %s94
    %p96 = scmp.eq.s32.totalorder %s95, 0
    %s98 = sadd.s32 %s97, 1
    %s99 = scalar_select %p96, %s97, %s98
    %p102 = pneg %p96
    %p103 = scmp.eq.s32.totalorder %s8, 3
    %p104 = por %p102, %p103
    %p105 = scmp.ne.s32.totalorder %s97, %s100
    %p106 = scmp.eq.s32.totalorder %s8, 0
    %p107 = por %p105, %p106
    %p108 = scmp.ne.s32.totalorder %s97, %s100
    %p109 = scmp.eq.s32.totalorder %s13, 3
    %p110 = por %p108, %p109
    %p111 = scmp.ne.s32.totalorder %s100, %s101
    %p112 = scmp.eq.s32.totalorder %s13, 0
    %p113 = por %p111, %p112
    %p114 = scmp.ne.s32.totalorder %s100, %s101
    %p115 = scmp.eq.s32.totalorder %s14, 3
    %p116 = por %p114, %p115
    %p118 = scmp.ne.s32.totalorder %s101, %s117
    %p119 = scmp.eq.s32.totalorder %s14, 0
    %p120 = por %p118, %p119
    %p121 = scmp.le.s32.totalorder 1, %s8
    %p122 = scmp.lt.s32.totalorder %s8, 5
    %p123 = pnand %p121, %p122
    %p124 = pneg %p123
    // Predicated region
    $region9: #{unet_innermost_forward.5} parent=5 // pred_check
      _
    $region10: #{unet_innermost_forward.5} parent=5 // pred_check_branch
      %126 = sbr.rel (%p123) target = $region12
    $region11: #{unet_innermost_forward.5} parent=5 // pred_region
      %s127 = ssub.s32 %s8, 1
    $region12: #{unet_innermost_forward.5} parent=5 // pred_fallthru
      _
    %p128 = scmp.lt.s32.totalorder %s8, 4
    // Predicated region
    $region13: #{unet_innermost_forward.5} parent=5 // pred_check
      %p129 = pneg %p128
    $region14: #{unet_innermost_forward.5} parent=5 // pred_check_branch
      %131 = sbr.rel (%p129) target = $region16
    $region15: #{unet_innermost_forward.5} parent=5 // pred_region
      // Predicated region
      $region17: #{unet_innermost_forward.5} parent=15 // pred_check
        %p132 = pneg %p51
      $region18: #{unet_innermost_forward.5} parent=15 // pred_check_branch
        %134 = sbr.rel (%p132) target = $region20
      $region19: #{unet_innermost_forward.5} parent=15 // pred_region
        %s135 = smul.u32 16, %s16
        %p136 = scmp.lt.s32.totalorder %s15, 3
        %s137 = scalar_select %p136, %s15, 3
        %p138 = scmp.lt.s32.totalorder %s135, 15
        %s139 = scalar_select %p138, %s135, 15
        %p140 = scmp.lt.s32.totalorder %s17, 0
        %s141 = scalar_select %p140, %s17, 0
        %s142 = sadd.s32 %s141, %s139
        %s143 = smul.addr %s137, 16
        %s144 = sadd.s32 %s142, %s143
        %s145 = smul.addr %s144, 4
        %s146 = scalar_lea.vmem %s0, %s145
        %s147 = smul.u32 16, %s16
      $region20: #{unet_innermost_forward.5} parent=15 // pred_fallthru
        _
      // Predicated region
      $region21: #{unet_innermost_forward.5} parent=15 // pred_check
        %p148 = pneg %p79
      $region22: #{unet_innermost_forward.5} parent=15 // pred_check_branch
        %150 = sbr.rel (%p148) target = $region24
      $region23: #{unet_innermost_forward.5} parent=15 // pred_region
        %s151 = smul.u32 16, %s17
        %p152 = scmp.lt.s32.totalorder %s15, 3
        %s153 = scalar_select %p152, %s15, 3
        %p154 = scmp.lt.s32.totalorder %s151, 15
        %s155 = scalar_select %p154, %s151, 15
        %s156 = smul.addr %s153, 16
        %s157 = sadd.s32 %s155, %s156
        %s158 = smul.addr %s157, 4
        %s159 = scalar_lea.vmem %s1, %s158
        %s160 = smul.u32 16, %s17
      $region24: #{unet_innermost_forward.5} parent=15 // pred_fallthru
        _
    $region16: #{unet_innermost_forward.5} parent=5 // pred_fallthru
      _
    %p161 = scmp.le.s32.totalorder 1, %s8
    %p162 = scmp.lt.s32.totalorder %s8, 5
    %p163 = pnand %p161, %p162
    %p164 = pneg %p163
    // Predicated region
    $region25: #{unet_innermost_forward.5} parent=5 // pred_check
      _
    $region26: #{unet_innermost_forward.5} parent=5 // pred_check_branch
      %166 = sbr.rel (%p163) target = $region28
    $region27: #{unet_innermost_forward.5} parent=5 // pred_region
      %s167 = ssub.s32 %s8, 1
      %s168 = smul.u32 16, %s19
      %p169 = scmp.lt.s32.totalorder %s18, 3
      %s170 = scalar_select %p169, %s18, 3
      %p171 = scmp.lt.s32.totalorder %s168, 15
      %s172 = scalar_select %p171, %s168, 15
      %p173 = scmp.lt.s32.totalorder %s20, 0
      %s174 = scalar_select %p173, %s20, 0
      %s175 = sadd.s32 %s174, %s172
      %s176 = smul.addr %s170, 16
      %s177 = sadd.s32 %s175, %s176
      %s178 = smul.addr %s177, 4
      %s179 = scalar_lea.vmem %s0, %s178
      %p180 = pneg %p57
      %p181 = pneg %p54
      %s182 = smul.u32 16, %s20
      %p183 = scmp.lt.s32.totalorder %s18, 3
      %s184 = scalar_select %p183, %s18, 3
      %p185 = scmp.lt.s32.totalorder %s182, 15
      %s186 = scalar_select %p185, %s182, 15
      %s187 = smul.addr %s184, 16
      %s188 = sadd.s32 %s186, %s187
      %s189 = smul.addr %s188, 4
      %s190 = scalar_lea.vmem %s1, %s189
      %p191 = pneg %p85
      %p192 = pneg %p82
      %p193 = pneg %p113
      %p194 = pneg %p110
      %s195 = smul.u32 16, %s19
      %p196 = scmp.lt.s32.totalorder %s18, 3
      %s197 = scalar_select %p196, %s18, 3
      %p198 = scmp.lt.s32.totalorder %s195, 15
      %s199 = scalar_select %p198, %s195, 15
      %s200 = smul.addr %s197, 16
      %s201 = sadd.s32 %s199, %s200
      %s202 = smul.addr %s201, 8
      %s203 = scalar_lea.vmem %s2, %s202
      %s204 = smul.u32 16, %s19
      %p205 = scmp.lt.s32.totalorder %s18, 3
      %s206 = scalar_select %p205, %s18, 3
      %p207 = scmp.lt.s32.totalorder %s204, 15
      %s208 = scalar_select %p207, %s204, 15
      %p209 = scmp.lt.s32.totalorder %s20, 0
      %s210 = scalar_select %p209, %s20, 0
      %s211 = sadd.s32 %s210, %s208
      %s212 = smul.addr %s206, 16
      %s213 = sadd.s32 %s211, %s212
      %s214 = smul.addr %s213, 4
      %s215 = scalar_lea.vmem %s0, %s214
      %s216 = smul.u32 16, %s19
      %s217 = smul.u32 16, %s20
      %p218 = scmp.lt.s32.totalorder %s18, 3
      %s219 = scalar_select %p218, %s18, 3
      %p220 = scmp.lt.s32.totalorder %s217, 15
      %s221 = scalar_select %p220, %s217, 15
      %s222 = smul.addr %s219, 16
      %s223 = sadd.s32 %s221, %s222
      %s224 = smul.addr %s223, 4
      %s225 = scalar_lea.vmem %s1, %s224
      %s226 = smul.u32 16, %s20
      %s227 = smul.u32 16, %s19
      %p228 = scmp.lt.s32.totalorder %s18, 3
      %s229 = scalar_select %p228, %s18, 3
      %p230 = scmp.lt.s32.totalorder %s227, 15
      %s231 = scalar_select %p230, %s227, 15
      %s232 = smul.addr %s229, 16
      %s233 = sadd.s32 %s231, %s232
      %s234 = smul.addr %s233, 8
      %s235 = scalar_lea.vmem %s2, %s234
      %s236 = smul.u32 16, %s19
      %p238 = scmp.eq.s32.totalorder %s20, 0
      // Predicated region
      $region29: #{unet_innermost_forward.5} parent=27 // pred_check
        %p239 = pneg %p238
      $region30: #{unet_innermost_forward.5} parent=27 // pred_check_branch
        %241 = sbr.rel (%p239) target = $region32
      $region31: #{unet_innermost_forward.5} parent=27 // pred_region
        %242 = vst [vmem:[#allocation2] sm:$0xff] 0.0
        %243 = vst [vmem:[#allocation2 + $0x8] sm:$0xff] 0.0
        %244 = vst [vmem:[#allocation2 + $0x10] sm:$0xff] 0.0
        %245 = vst [vmem:[#allocation2 + $0x18] sm:$0xff] 0.0
        %246 = vst [vmem:[#allocation2 + $0x20] sm:$0xff] 0.0
        %247 = vst [vmem:[#allocation2 + $0x28] sm:$0xff] 0.0
        %248 = vst [vmem:[#allocation2 + $0x30] sm:$0xff] 0.0
        %249 = vst [vmem:[#allocation2 + $0x38] sm:$0xff] 0.0
        %250 = vst [vmem:[#allocation2 + $0x40] sm:$0xff] 0.0
        %251 = vst [vmem:[#allocation2 + $0x48] sm:$0xff] 0.0
        %252 = vst [vmem:[#allocation2 + $0x50] sm:$0xff] 0.0
        %253 = vst [vmem:[#allocation2 + $0x58] sm:$0xff] 0.0
        %254 = vst [vmem:[#allocation2 + $0x60] sm:$0xff] 0.0
        %255 = vst [vmem:[#allocation2 + $0x68] sm:$0xff] 0.0
        %256 = vst [vmem:[#allocation2 + $0x70] sm:$0xff] 0.0
        %257 = vst [vmem:[#allocation2 + $0x78] sm:$0xff] 0.0
      $region32: #{unet_innermost_forward.5} parent=27 // pred_fallthru
        _
      %v258 = vld [vmem:[%s215] sm:$0xf]
      %v259 = vld [vmem:[%s215 + $0x4] sm:$0xf]
      %v260 = vld [vmem:[%s215 + $0x8] sm:$0xf]
      %v261 = vld [vmem:[%s215 + $0xc] sm:$0xf]
      %v262 = vld [vmem:[%s215 + $0x10] sm:$0xf]
      %v263 = vld [vmem:[%s215 + $0x14] sm:$0xf]
      %v264 = vld [vmem:[%s215 + $0x18] sm:$0xf]
      %v265 = vld [vmem:[%s215 + $0x1c] sm:$0xf]
      %v266 = vld [vmem:[%s215 + $0x20] sm:$0xf]
      %v267 = vld [vmem:[%s215 + $0x24] sm:$0xf]
      %v268 = vld [vmem:[%s215 + $0x28] sm:$0xf]
      %v269 = vld [vmem:[%s215 + $0x2c] sm:$0xf]
      %v270 = vld [vmem:[%s215 + $0x30] sm:$0xf]
      %v271 = vld [vmem:[%s215 + $0x34] sm:$0xf]
      %v272 = vld [vmem:[%s215 + $0x38] sm:$0xf]
      %v273 = vld [vmem:[%s215 + $0x3c] sm:$0xf]
      %v274 = vunpack.c.l.bf16 %v258
      %v275 = vunpack.c.l.bf16 %v259
      %v276 = vunpack.c.l.bf16 %v260
      %v277 = vunpack.c.l.bf16 %v261
      %v278 = vunpack.c.l.bf16 %v262
      %v279 = vunpack.c.l.bf16 %v263
      %v280 = vunpack.c.l.bf16 %v264
      %v281 = vunpack.c.l.bf16 %v265
      %v282 = vunpack.c.l.bf16 %v266
      %v283 = vunpack.c.l.bf16 %v267
      %v284 = vunpack.c.l.bf16 %v268
      %v285 = vunpack.c.l.bf16 %v269
      %v286 = vunpack.c.l.bf16 %v270
      %v287 = vunpack.c.l.bf16 %v271
      %v288 = vunpack.c.l.bf16 %v272
      %v289 = vunpack.c.l.bf16 %v273
      %vm290 = vcmp.gt.f32.partialorder %v274, 0.0
      %vm291 = vcmp.gt.f32.partialorder %v275, 0.0
      %vm292 = vcmp.gt.f32.partialorder %v276, 0.0
      %vm293 = vcmp.gt.f32.partialorder %v277, 0.0
      %vm294 = vcmp.gt.f32.partialorder %v278, 0.0
      %vm295 = vcmp.gt.f32.partialorder %v279, 0.0
      %vm296 = vcmp.gt.f32.partialorder %v280, 0.0
      %vm297 = vcmp.gt.f32.partialorder %v281, 0.0
      %vm298 = vcmp.gt.f32.partialorder %v282, 0.0
      %vm299 = vcmp.gt.f32.partialorder %v283, 0.0
      %vm300 = vcmp.gt.f32.partialorder %v284, 0.0
      %vm301 = vcmp.gt.f32.partialorder %v285, 0.0
      %vm302 = vcmp.gt.f32.partialorder %v286, 0.0
      %vm303 = vcmp.gt.f32.partialorder %v287, 0.0
      %vm304 = vcmp.gt.f32.partialorder %v288, 0.0
      %vm305 = vcmp.gt.f32.partialorder %v289, 0.0
      %v306 = vmul.f32 %v274, 0.0
      %v307 = vmul.f32 %v275, 0.0
      %v308 = vmul.f32 %v276, 0.0
      %v309 = vmul.f32 %v277, 0.0
      %v310 = vmul.f32 %v278, 0.0
      %v311 = vmul.f32 %v279, 0.0
      %v312 = vmul.f32 %v280, 0.0
      %v313 = vmul.f32 %v281, 0.0
      %v314 = vmul.f32 %v282, 0.0
      %v315 = vmul.f32 %v283, 0.0
      %v316 = vmul.f32 %v284, 0.0
      %v317 = vmul.f32 %v285, 0.0
      %v318 = vmul.f32 %v286, 0.0
      %v319 = vmul.f32 %v287, 0.0
      %v320 = vmul.f32 %v288, 0.0
      %v321 = vmul.f32 %v289, 0.0
      %v322 = vsel %vm290, %v274, %v306
      %v323 = vsel %vm291, %v275, %v307
      %v324 = vsel %vm292, %v276, %v308
      %v325 = vsel %vm293, %v277, %v309
      %v326 = vsel %vm294, %v278, %v310
      %v327 = vsel %vm295, %v279, %v311
      %v328 = vsel %vm296, %v280, %v312
      %v329 = vsel %vm297, %v281, %v313
      %v330 = vsel %vm298, %v282, %v314
      %v331 = vsel %vm299, %v283, %v315
      %v332 = vsel %vm300, %v284, %v316
      %v333 = vsel %vm301, %v285, %v317
      %v334 = vsel %vm302, %v286, %v318
      %v335 = vsel %vm303, %v287, %v319
      %v336 = vsel %vm304, %v288, %v320
      %v337 = vsel %vm305, %v289, %v321
      %v338 = vld [vmem:[#allocation2] sm:$0xff]
      %v339 = vld [vmem:[#allocation2 + $0x8] sm:$0xff]
      %v340 = vld [vmem:[#allocation2 + $0x10] sm:$0xff]
      %v341 = vld [vmem:[#allocation2 + $0x18] sm:$0xff]
      %v342 = vld [vmem:[#allocation2 + $0x20] sm:$0xff]
      %v343 = vld [vmem:[#allocation2 + $0x28] sm:$0xff]
      %v344 = vld [vmem:[#allocation2 + $0x30] sm:$0xff]
      %v345 = vld [vmem:[#allocation2 + $0x38] sm:$0xff]
      %v346 = vld [vmem:[#allocation2 + $0x40] sm:$0xff]
      %v347 = vld [vmem:[#allocation2 + $0x48] sm:$0xff]
      %v348 = vld [vmem:[#allocation2 + $0x50] sm:$0xff]
      %v349 = vld [vmem:[#allocation2 + $0x58] sm:$0xff]
      %v350 = vld [vmem:[#allocation2 + $0x60] sm:$0xff]
      %v351 = vld [vmem:[#allocation2 + $0x68] sm:$0xff]
      %v352 = vld [vmem:[#allocation2 + $0x70] sm:$0xff]
      %v353 = vld [vmem:[#allocation2 + $0x78] sm:$0xff]
      %v354 = vpack.c.bf16 %v323, %v322
      %v355 = vpack.c.bf16 %v325, %v324
      %v356 = vpack.c.bf16 %v327, %v326
      %v357 = vpack.c.bf16 %v329, %v328
      %v358 = vpack.c.bf16 %v331, %v330
      %v359 = vpack.c.bf16 %v333, %v332
      %v360 = vpack.c.bf16 %v335, %v334
      %v361 = vpack.c.bf16 %v337, %v336
      %v362 = vld [vmem:[%s225] sm:$0xf]
      %v363 = vld [vmem:[%s225 + $0x4] sm:$0xf]
      %v364 = vld [vmem:[%s225 + $0x8] sm:$0xf]
      %v365 = vld [vmem:[%s225 + $0xc] sm:$0xf]
      %v366 = vld [vmem:[%s225 + $0x10] sm:$0xf]
      %v367 = vld [vmem:[%s225 + $0x14] sm:$0xf]
      %v368 = vld [vmem:[%s225 + $0x18] sm:$0xf]
      %v369 = vld [vmem:[%s225 + $0x1c] sm:$0xf]
      %v370 = vld [vmem:[%s225 + $0x20] sm:$0xf]
      %v371 = vld [vmem:[%s225 + $0x24] sm:$0xf]
      %v372 = vld [vmem:[%s225 + $0x28] sm:$0xf]
      %v373 = vld [vmem:[%s225 + $0x2c] sm:$0xf]
      %v374 = vld [vmem:[%s225 + $0x30] sm:$0xf]
      %v375 = vld [vmem:[%s225 + $0x34] sm:$0xf]
      %v376 = vld [vmem:[%s225 + $0x38] sm:$0xf]
      %v377 = vld [vmem:[%s225 + $0x3c] sm:$0xf]
      %v394 = vunpack.c.l.b16 %v362
      %v395 = vunpack.c.l.b16 %v363
      %v396 = vunpack.c.l.b16 %v364
      %v397 = vunpack.c.l.b16 %v365
      %v398 = vunpack.c.l.b16 %v366
      %v399 = vunpack.c.l.b16 %v367
      %v400 = vunpack.c.l.b16 %v368
      %v401 = vunpack.c.l.b16 %v369
      %v402 = vunpack.c.l.b16 %v370
      %v403 = vunpack.c.l.b16 %v371
      %v404 = vunpack.c.l.b16 %v372
      %v405 = vunpack.c.l.b16 %v373
      %v406 = vunpack.c.l.b16 %v374
      %v407 = vunpack.c.l.b16 %v375
      %v408 = vunpack.c.l.b16 %v376
      %v409 = vunpack.c.l.b16 %v377
      %v410 = vpack.c.b16 %v395, %v394
      %v411 = vpack.c.b16 %v397, %v396
      %v412 = vpack.c.b16 %v399, %v398
      %v413 = vpack.c.b16 %v401, %v400
      %v414 = vpack.c.b16 %v403, %v402
      %v415 = vpack.c.b16 %v405, %v404
      %v416 = vpack.c.b16 %v407, %v406
      %v417 = vpack.c.b16 %v409, %v408
      %426 = vmatprep.subr.bf16.mxu0 0
      %427 = vmatpush1.bf16.msra.mxu0 %v417
      %428 = vmatprep.subr.bf16.mxu0 0
      %429 = vmatpush1.bf16.msra.mxu0 %v416
      %430 = vmatprep.subr.bf16.mxu0 0
      %431 = vmatpush1.bf16.msra.mxu0 %v415
      %432 = vmatprep.subr.bf16.mxu0 0
      %433 = vmatpush1.bf16.msra.mxu0 %v414
      %434 = vmatprep.subr.bf16.mxu0 0
      %435 = vmatpush1.bf16.msra.mxu0 %v413
      %436 = vmatprep.subr.bf16.mxu0 0
      %437 = vmatpush1.bf16.msra.mxu0 %v412
      %438 = vmatprep.subr.bf16.mxu0 0
      %439 = vmatpush1.bf16.msra.mxu0 %v411
      %440 = vmatprep.subr.bf16.mxu0 0
      %441 = vmatpush1.bf16.msra.mxu0 %v410
      %442 = vmatprep.subr.bf16.mxu0 0
      %443 = vmatpush2.bf16.msra.mxu0 0
      %444 = vmatprep.subr.bf16.mxu0 0
      %445 = vmatpush2.bf16.msra.mxu0 0
      %446 = vmatprep.subr.bf16.mxu0 0
      %447 = vmatpush2.bf16.msra.mxu0 0
      %448 = vmatprep.subr.bf16.mxu0 0
      %449 = vmatpush2.bf16.msra.mxu0 0
      %450 = vmatprep.subr.bf16.mxu0 0
      %451 = vmatpush2.bf16.msra.mxu0 0
      %452 = vmatprep.subr.bf16.mxu0 0
      %453 = vmatpush2.bf16.msra.mxu0 0
      %454 = vmatprep.subr.bf16.mxu0 0
      %455 = vmatpush2.bf16.msra.mxu0 0
      %456 = vmatprep.subr.bf16.mxu0 0
      %457 = vmatpush2.bf16.msra.mxu0 0
      %458 = vmatprep.mubr.bf16.mxu0 0
      %459 = vmatmul.mubr.bf16.gmra.mxu0 %v354
      %v460 = vpop.f32.mrf.mxu0
      %v461 = vadd.f32 0.0, %v460
      %v462 = vpop.f32.mrf.mxu0
      %v463 = vpop.f32.mrf.mxu0
      %v464 = vadd.f32 0.0, %v463
      %v465 = vpop.f32.mrf.mxu0
      %466 = vmatprep.mubr.bf16.mxu0 0
      %467 = vmatmul.mubr.bf16.gmra.mxu0 %v355
      %v468 = vpop.f32.mrf.mxu0
      %v469 = vadd.f32 0.0, %v468
      %v470 = vpop.f32.mrf.mxu0
      %v471 = vpop.f32.mrf.mxu0
      %v472 = vadd.f32 0.0, %v471
      %v473 = vpop.f32.mrf.mxu0
      %474 = vmatprep.mubr.bf16.mxu0 0
      %475 = vmatmul.mubr.bf16.gmra.mxu0 %v356
      %v476 = vpop.f32.mrf.mxu0
      %v477 = vadd.f32 0.0, %v476
      %v478 = vpop.f32.mrf.mxu0
      %v479 = vpop.f32.mrf.mxu0
      %v480 = vadd.f32 0.0, %v479
      %v481 = vpop.f32.mrf.mxu0
      %482 = vmatprep.mubr.bf16.mxu0 0
      %483 = vmatmul.mubr.bf16.gmra.mxu0 %v357
      %v484 = vpop.f32.mrf.mxu0
      %v485 = vadd.f32 0.0, %v484
      %v486 = vpop.f32.mrf.mxu0
      %v487 = vpop.f32.mrf.mxu0
      %v488 = vadd.f32 0.0, %v487
      %v489 = vpop.f32.mrf.mxu0
      %490 = vmatprep.mubr.bf16.mxu0 0
      %491 = vmatmul.mubr.bf16.gmra.mxu0 %v358
      %v492 = vpop.f32.mrf.mxu0
      %v493 = vadd.f32 0.0, %v492
      %v494 = vpop.f32.mrf.mxu0
      %v495 = vpop.f32.mrf.mxu0
      %v496 = vadd.f32 0.0, %v495
      %v497 = vpop.f32.mrf.mxu0
      %498 = vmatprep.mubr.bf16.mxu0 0
      %499 = vmatmul.mubr.bf16.gmra.mxu0 %v359
      %v500 = vpop.f32.mrf.mxu0
      %v501 = vadd.f32 0.0, %v500
      %v502 = vpop.f32.mrf.mxu0
      %v503 = vpop.f32.mrf.mxu0
      %v504 = vadd.f32 0.0, %v503
      %v505 = vpop.f32.mrf.mxu0
      %506 = vmatprep.mubr.bf16.mxu0 0
      %507 = vmatmul.mubr.bf16.gmra.mxu0 %v360
      %v508 = vpop.f32.mrf.mxu0
      %v509 = vadd.f32 0.0, %v508
      %v510 = vpop.f32.mrf.mxu0
      %v511 = vpop.f32.mrf.mxu0
      %v512 = vadd.f32 0.0, %v511
      %v513 = vpop.f32.mrf.mxu0
      %514 = vmatprep.mubr.bf16.mxu0 0
      %515 = vmatmul.mubr.bf16.gmra.mxu0 %v361
      %v516 = vpop.f32.mrf.mxu0
      %v517 = vadd.f32 0.0, %v516
      %v518 = vpop.f32.mrf.mxu0
      %v519 = vpop.f32.mrf.mxu0
      %v520 = vadd.f32 0.0, %v519
      %v521 = vpop.f32.mrf.mxu0
      %522 = vdwg.mxu0
      %v523 = vadd.f32 %v338, %v461
      %v524 = vadd.f32 %v339, %v464
      %v525 = vadd.f32 %v340, %v469
      %v526 = vadd.f32 %v341, %v472
      %v527 = vadd.f32 %v342, %v477
      %v528 = vadd.f32 %v343, %v480
      %v529 = vadd.f32 %v344, %v485
      %v530 = vadd.f32 %v345, %v488
      %v531 = vadd.f32 %v346, %v493
      %v532 = vadd.f32 %v347, %v496
      %v533 = vadd.f32 %v348, %v501
      %v534 = vadd.f32 %v349, %v504
      %v535 = vadd.f32 %v350, %v509
      %v536 = vadd.f32 %v351, %v512
      %v537 = vadd.f32 %v352, %v517
      %v538 = vadd.f32 %v353, %v520
      %539 = vst [vmem:[#allocation2] sm:$0xff] %v523
      %540 = vst [vmem:[#allocation2 + $0x8] sm:$0xff] %v524
      %541 = vst [vmem:[#allocation2 + $0x10] sm:$0xff] %v525
      %542 = vst [vmem:[#allocation2 + $0x18] sm:$0xff] %v526
      %543 = vst [vmem:[#allocation2 + $0x20] sm:$0xff] %v527
      %544 = vst [vmem:[#allocation2 + $0x28] sm:$0xff] %v528
      %545 = vst [vmem:[#allocation2 + $0x30] sm:$0xff] %v529
      %546 = vst [vmem:[#allocation2 + $0x38] sm:$0xff] %v530
      %547 = vst [vmem:[#allocation2 + $0x40] sm:$0xff] %v531
      %548 = vst [vmem:[#allocation2 + $0x48] sm:$0xff] %v532
      %549 = vst [vmem:[#allocation2 + $0x50] sm:$0xff] %v533
      %550 = vst [vmem:[#allocation2 + $0x58] sm:$0xff] %v534
      %551 = vst [vmem:[#allocation2 + $0x60] sm:$0xff] %v535
      %552 = vst [vmem:[#allocation2 + $0x68] sm:$0xff] %v536
      %553 = vst [vmem:[#allocation2 + $0x70] sm:$0xff] %v537
      %554 = vst [vmem:[#allocation2 + $0x78] sm:$0xff] %v538
      // Predicated region
      $region33: #{unet_innermost_forward.5} parent=27 // pred_check
        %p555 = pneg %p238
      $region34: #{unet_innermost_forward.5} parent=27 // pred_check_branch
        %557 = sbr.rel (%p555) target = $region36
      $region35: #{unet_innermost_forward.5} parent=27 // pred_region
        %v558 = vld [vmem:[#allocation2] sm:$0xff]
        %v559 = vld [vmem:[#allocation2 + $0x8] sm:$0xff]
        %v560 = vld [vmem:[#allocation2 + $0x10] sm:$0xff]
        %v561 = vld [vmem:[#allocation2 + $0x18] sm:$0xff]
        %v562 = vld [vmem:[#allocation2 + $0x20] sm:$0xff]
        %v563 = vld [vmem:[#allocation2 + $0x28] sm:$0xff]
        %v564 = vld [vmem:[#allocation2 + $0x30] sm:$0xff]
        %v565 = vld [vmem:[#allocation2 + $0x38] sm:$0xff]
        %v566 = vld [vmem:[#allocation2 + $0x40] sm:$0xff]
        %v567 = vld [vmem:[#allocation2 + $0x48] sm:$0xff]
        %v568 = vld [vmem:[#allocation2 + $0x50] sm:$0xff]
        %v569 = vld [vmem:[#allocation2 + $0x58] sm:$0xff]
        %v570 = vld [vmem:[#allocation2 + $0x60] sm:$0xff]
        %v571 = vld [vmem:[#allocation2 + $0x68] sm:$0xff]
        %v572 = vld [vmem:[#allocation2 + $0x70] sm:$0xff]
        %v573 = vld [vmem:[#allocation2 + $0x78] sm:$0xff]
        %574 = vst [vmem:[%s235] sm:$0xff] %v558
        %575 = vst [vmem:[%s235 + $0x8] sm:$0xff] %v559
        %576 = vst [vmem:[%s235 + $0x10] sm:$0xff] %v560
        %577 = vst [vmem:[%s235 + $0x18] sm:$0xff] %v561
        %578 = vst [vmem:[%s235 + $0x20] sm:$0xff] %v562
        %579 = vst [vmem:[%s235 + $0x28] sm:$0xff] %v563
        %580 = vst [vmem:[%s235 + $0x30] sm:$0xff] %v564
        %581 = vst [vmem:[%s235 + $0x38] sm:$0xff] %v565
        %582 = vst [vmem:[%s235 + $0x40] sm:$0xff] %v566
        %583 = vst [vmem:[%s235 + $0x48] sm:$0xff] %v567
        %584 = vst [vmem:[%s235 + $0x50] sm:$0xff] %v568
        %585 = vst [vmem:[%s235 + $0x58] sm:$0xff] %v569
        %586 = vst [vmem:[%s235 + $0x60] sm:$0xff] %v570
        %587 = vst [vmem:[%s235 + $0x68] sm:$0xff] %v571
        %588 = vst [vmem:[%s235 + $0x70] sm:$0xff] %v572
        %589 = vst [vmem:[%s235 + $0x78] sm:$0xff] %v573
      $region36: #{unet_innermost_forward.5} parent=27 // pred_fallthru
        _
      %s590 = smul.u32 16, %s19
      %p591 = scmp.lt.s32.totalorder %s18, 3
      %s592 = scalar_select %p591, %s18, 3
      %p593 = scmp.lt.s32.totalorder %s590, 15
      %s594 = scalar_select %p593, %s590, 15
      %s595 = smul.addr %s592, 16
      %s596 = sadd.s32 %s594, %s595
      %s597 = smul.addr %s596, 8
      %s598 = scalar_lea.vmem %s2, %s597
      // Predicated region
      $region37: #{unet_innermost_forward.5} parent=27 // pred_check
        %p599 = pneg %p110
      $region38: #{unet_innermost_forward.5} parent=27 // pred_check_branch
        %601 = sbr.rel (%p599) target = $region40
      $region39: #{unet_innermost_forward.5} parent=27 // pred_region
        %s602 = smul.u32 16, %s19
      $region40: #{unet_innermost_forward.5} parent=27 // pred_fallthru
        _
    $region28: #{unet_innermost_forward.5} parent=5 // pred_fallthru
      _
    %p603 = scmp.le.s32.totalorder 2, %s8
    // Predicated region
    $region41: #{unet_innermost_forward.5} parent=5 // pred_check
      %p604 = pneg %p603
    $region42: #{unet_innermost_forward.5} parent=5 // pred_check_branch
      %606 = sbr.rel (%p604) target = $region44
    $region43: #{unet_innermost_forward.5} parent=5 // pred_region
      %s607 = ssub.s32 %s8, 2
      // Predicated region
      $region45: #{unet_innermost_forward.5} parent=43 // pred_check
        %p608 = pneg %p116
      $region46: #{unet_innermost_forward.5} parent=43 // pred_check_branch
        %610 = sbr.rel (%p608) target = $region48
      $region47: #{unet_innermost_forward.5} parent=43 // pred_region
        %s611 = smul.u32 16, %s22
        %p612 = scmp.lt.s32.totalorder %s21, 3
        %s613 = scalar_select %p612, %s21, 3
        %p614 = scmp.lt.s32.totalorder %s611, 15
        %s615 = scalar_select %p614, %s611, 15
        %s616 = smul.addr %s613, 16
        %s617 = sadd.s32 %s615, %s616
        %s618 = smul.addr %s617, 8
        %s619 = scalar_lea.vmem %s2, %s618
      $region48: #{unet_innermost_forward.5} parent=43 // pred_fallthru
        _
    $region44: #{unet_innermost_forward.5} parent=5 // pred_fallthru
      _
  $region6: #{unet_innermost_forward.5} parent=0 // loop_footer
    %s12 = sadd.s32 1, %s8
  $region7: #{unet_innermost_forward.5} parent=0 // loop_footer_branch
    %7 = sbr.rel target = $region3
  $region8: #{unet_innermost_forward.5} parent=0 // loop_exit
    _

</llo_original>
